<compile_context>
chip_gen: v6e
topology: v6e:2x2x1
jax: 0.10.0
libtpu: 0.0.40
codegen_flags: <defaults>
</compile_context>

<pallas_src>
import math

import jax
import jax.numpy as jnp
from jax.experimental import pallas as pl
from jax.experimental.pallas import tpu as pltpu


# ----------------------------------------------------------------------------
# Pallas kernel: fused (weight * mask) followed by x @ masked_weight  (K,N lay)
# ----------------------------------------------------------------------------
def masked_linear_kernel(x_ref, wt_ref, mt_ref, o_ref, acc_ref):
    # x_ref: (tm, tk) bf16, wt_ref: (tk, tn) bf16, mt_ref: (tk, tn) int8,
    # o_ref: (tm, tn) f32, acc_ref: (tm, tn) f32 VMEM scratch.
    @pl.when(pl.program_id(2) == 0)
    def _init():
        acc_ref[...] = jnp.zeros_like(acc_ref)

    w = wt_ref[...]
    # 0/1 mask applied as an integer-predicate select (no bf16 VALU multiply,
    # works identically on v5e which lacks a bf16 VPU path).
    wm = jnp.where(mt_ref[...] != 0, w, jnp.zeros_like(w))
    acc_ref[...] += jnp.dot(x_ref[...], wm, preferred_element_type=jnp.float32)

    @pl.when(pl.program_id(2) == pl.num_programs(2) - 1)
    def _finalize():
        o_ref[...] = acc_ref[...].astype(o_ref.dtype)


def _round_up(v, m):
    return ((v + m - 1) // m) * m


def masked_linear(x2d, weight, mask, *, tm=256, tn=256, tk=512):
    """x2d: (M, K) f32, weight/mask: (N, K) f32 (nn.Linear layout) -> (M, N) f32."""
    M, K = x2d.shape
    N, K2 = weight.shape
    assert K == K2 and mask.shape == weight.shape

    # Shrink tiles for small problems while keeping lane/sublane alignment.
    tm = min(tm, _round_up(M, 8))
    tn = min(tn, _round_up(N, 128))
    tk = min(tk, _round_up(K, 128))
    Mp, Np, Kp = _round_up(M, tm), _round_up(N, tn), _round_up(K, tk)

    # One-time layout / dtype prep (parameter-shaped, outside the hot loop):
    # bf16 operands for the MXU, (K, N) weight/mask layout, int8 mask stream.
    xb = x2d.astype(jnp.bfloat16)
    wt = weight.T.astype(jnp.bfloat16)          # (K, N)
    mt = mask.T.astype(jnp.int8)                # (K, N), 0/1

    if (Mp, Kp) != (M, K):
        xb = jnp.pad(xb, ((0, Mp - M), (0, Kp - K)))
    if (Kp, Np) != (K, N):
        wt = jnp.pad(wt, ((0, Kp - K), (0, Np - N)))
        mt = jnp.pad(mt, ((0, Kp - K), (0, Np - N)))

    grid = (Mp // tm, Np // tn, Kp // tk)       # K innermost (reduction)

    out = pl.pallas_call(
        masked_linear_kernel,
        out_shape=jax.ShapeDtypeStruct((Mp, Np), jnp.float32),
        grid_spec=pltpu.PrefetchScalarGridSpec(
            num_scalar_prefetch=0,
            grid=grid,
            in_specs=[
                pl.BlockSpec((tm, tk), lambda i, j, k: (i, k)),   # x
                pl.BlockSpec((tk, tn), lambda i, j, k: (k, j)),   # weight.T
                pl.BlockSpec((tk, tn), lambda i, j, k: (k, j)),   # mask.T
            ],
            out_specs=pl.BlockSpec((tm, tn), lambda i, j, k: (i, j)),
            scratch_shapes=[pltpu.VMEM((tm, tn), jnp.float32)],
        ),
        compiler_params=pltpu.CompilerParams(
            dimension_semantics=("parallel", "parallel", "arbitrary")),
    )(xb, wt, mt)

    return out[:M, :N]


# ----------------------------------------------------------------------------
# Parameter setup (plain JAX glue), mirroring MaskedLinear.__init__ defaults
# ----------------------------------------------------------------------------
def kaiming_uniform_a_sqrt5(key, shape):
    """nn.init.kaiming_uniform_(w, a=sqrt(5)) for a 2D (out, in) weight."""
    fan_in = shape[1]
    gain = math.sqrt(2.0 / (1.0 + 5.0))        # a = sqrt(5)
    bound = gain * math.sqrt(3.0 / fan_in)     # == 1/sqrt(fan_in)
    return jax.random.uniform(key, shape, jnp.float32, -bound, bound)


def get_subnet_mask(scores, k):
    """Exact GetSubnet.forward semantics on |scores|: keep top-k fraction."""
    # TODO(synk): the global parameter-shaped sort of GetSubnet has no clean
    # in-kernel Pallas equivalent; it is computed once here in plain JAX.
    flat = jnp.abs(scores).ravel()
    idx = jnp.argsort(flat)                    # ascending, like torch .sort()
    j = int((1.0 - k) * flat.size)
    flat_mask = jnp.zeros_like(flat)
    flat_mask = flat_mask.at[idx[:j]].set(0.0)
    flat_mask = flat_mask.at[idx[j:]].set(1.0)
    return flat_mask.reshape(scores.shape)


if __name__ == "__main__":
    # Module config (defaults): bias=False, prune_ratio=0.5, super_mask,
    # mask_init='standard', init='standard', group=1, training mode.
    in_features = 1024
    out_features = 384
    batch, seq = 2, 64
    prune_ratio = 0.5

    key = jax.random.PRNGKey(0)
    k_w, k_s, k_x = jax.random.split(key, 3)

    weight = kaiming_uniform_a_sqrt5(k_w, (out_features, in_features))
    scores = kaiming_uniform_a_sqrt5(k_s, (out_features, in_features))
    mask = get_subnet_mask(scores, prune_ratio)   # binary 0/1, f32

    x = jax.random.normal(k_x, (batch, seq, in_features), jnp.float32)
    x2d = x.reshape(batch * seq, in_features)     # F.linear acts on last dim

    y2d = masked_linear(x2d, weight, mask)
    y = y2d.reshape(batch, seq, out_features)
    jax.block_until_ready(y)

    # Reference with matching bf16 operand rounding (f32 accumulation), same
    # math as the kernel: x_bf16 @ (weight_bf16 * mask).T
    xr = x2d.astype(jnp.bfloat16).astype(jnp.float32)
    wr = weight.astype(jnp.bfloat16).astype(jnp.float32) * mask
    y_ref = jnp.dot(xr, wr.T, precision=jax.lax.Precision.HIGHEST)
    assert jnp.allclose(y2d, y_ref, atol=2e-2, rtol=2e-2), (
        float(jnp.max(jnp.abs(y2d - y_ref))))

    # Looser sanity check against the original full-f32 module math.
    y_f32 = x2d @ (weight * mask).T
    assert jnp.allclose(y2d, y_f32, atol=1e-1, rtol=1e-1)

    print("KERNEL_OK")
</pallas_src>

<mosaic_0001>
module attributes {stable_mosaic.version = 11 : i64} {
  func.func @masked_linear_kernel(%arg0: i32, %arg1: i32, %arg2: i32, %arg3: memref<128x512xbf16, #tpu.memory_space<vmem>>, %arg4: memref<512x256xbf16, #tpu.memory_space<vmem>>, %arg5: memref<512x256xi8, #tpu.memory_space<vmem>>, %arg6: memref<128x256xf32, #tpu.memory_space<vmem>>, %arg7: memref<128x256xf32, #tpu.memory_space<vmem>>) attributes {dimension_semantics = [#tpu.dimension_semantics<parallel>, #tpu.dimension_semantics<parallel>, #tpu.dimension_semantics<arbitrary>], iteration_bounds = array<i64: 1, 2, 2>, scalar_prefetch = 0 : i64, scratch_operands = 1 : i64, tpu.core_type = #tpu.core_type<tc>, window_params = [{transform_indices = @transform_0, window_bounds = array<i64: 128, 512>}, {transform_indices = @transform_1, window_bounds = array<i64: 512, 256>}, {transform_indices = @transform_2, window_bounds = array<i64: 512, 256>}, {transform_indices = @transform_3, window_bounds = array<i64: 128, 256>}]} {
    %c0_i32 = arith.constant 0 : i32
    %0 = arith.cmpi eq, %arg2, %c0_i32 : i32
    %1 = arith.extui %0 : i1 to i32
    %c0_i32_0 = arith.constant 0 : i32
    %2 = arith.cmpi ne, %1, %c0_i32_0 : i32
    scf.if %2 {
      %cst_12 = arith.constant 0.000000e+00 : f32
      %17 = vector.broadcast %cst_12 : f32 to vector<128x256xf32>
      %c0_13 = arith.constant 0 : index
      %c0_14 = arith.constant 0 : index
      %18 = vector.load %arg7[%c0_13, %c0_14] : memref<128x256xf32, #tpu.memory_space<vmem>>, vector<128x256xf32>
      tpu.vector_store %arg7[%c0_13, %c0_14], %17 {strides = array<i32>} : memref<128x256xf32, #tpu.memory_space<vmem>>, vector<128x256xf32>,
    } else {
    }
    %c0 = arith.constant 0 : index
    %c0_1 = arith.constant 0 : index
    %3 = vector.load %arg4[%c0, %c0_1] : memref<512x256xbf16, #tpu.memory_space<vmem>>, vector<512x256xbf16>
    %c0_2 = arith.constant 0 : index
    %c0_3 = arith.constant 0 : index
    %4 = vector.load %arg5[%c0_2, %c0_3] : memref<512x256xi8, #tpu.memory_space<vmem>>, vector<512x256xi8>
    %c0_i8 = arith.constant 0 : i8
    %5 = vector.broadcast %c0_i8 : i8 to vector<512x256xi8>
    %6 = arith.cmpi ne, %4, %5 : vector<512x256xi8>
    %cst = arith.constant 0.000000e+00 : bf16
    %7 = vector.broadcast %cst : bf16 to vector<512x256xbf16>
    %8 = arith.select %6, %3, %7 : vector<512x256xi1>, vector<512x256xbf16>
    %c0_4 = arith.constant 0 : index
    %c0_5 = arith.constant 0 : index
    %9 = vector.load %arg7[%c0_4, %c0_5] : memref<128x256xf32, #tpu.memory_space<vmem>>, vector<128x256xf32>
    %c0_6 = arith.constant 0 : index
    %c0_7 = arith.constant 0 : index
    %10 = vector.load %arg3[%c0_6, %c0_7] : memref<128x512xbf16, #tpu.memory_space<vmem>>, vector<128x512xbf16>
    %cst_8 = arith.constant dense<0.000000e+00> : vector<128x256xf32>
    %11 = tpu.matmul %10, %8, %cst_8 {dimension_numbers = #tpu.dot_dimension_numbers<[1], [0], [0], [1], [0, 0, 1, 1], [], []>} : vector<128x512xbf16>, vector<512x256xbf16>, vector<128x256xf32> -> vector<128x256xf32>
    %12 = arith.addf %9, %11 : vector<128x256xf32>
    %c0_9 = arith.constant 0 : index
    %c0_10 = arith.constant 0 : index
    %13 = vector.load %arg7[%c0_9, %c0_10] : memref<128x256xf32, #tpu.memory_space<vmem>>, vector<128x256xf32>
    tpu.vector_store %arg7[%c0_9, %c0_10], %12 {strides = array<i32>} : memref<128x256xf32, #tpu.memory_space<vmem>>, vector<128x256xf32>,
    %c1_i32 = arith.constant 1 : i32
    %14 = arith.cmpi eq, %arg2, %c1_i32 : i32
    %15 = arith.extui %14 : i1 to i32
    %c0_i32_11 = arith.constant 0 : i32
    %16 = arith.cmpi ne, %15, %c0_i32_11 : i32
    scf.if %16 {
      %c0_12 = arith.constant 0 : index
      %c0_13 = arith.constant 0 : index
      %17 = vector.load %arg7[%c0_12, %c0_13] : memref<128x256xf32, #tpu.memory_space<vmem>>, vector<128x256xf32>
      %c0_14 = arith.constant 0 : index
      %c0_15 = arith.constant 0 : index
      %18 = vector.load %arg6[%c0_14, %c0_15] : memref<128x256xf32, #tpu.memory_space<vmem>>, vector<128x256xf32>
      tpu.vector_store %arg6[%c0_14, %c0_15], %17 {strides = array<i32>} : memref<128x256xf32, #tpu.memory_space<vmem>>, vector<128x256xf32>,
    } else {
    }
    return
  }
  func.func @transform_0(%arg0: i32, %arg1: i32, %arg2: i32) -> (i32, i32) {
    %c0_i32 = arith.constant 0 : i32
    return %arg0, %arg2 : i32, i32
  }
  func.func @transform_1(%arg0: i32, %arg1: i32, %arg2: i32) -> (i32, i32) {
    %c0_i32 = arith.constant 0 : i32
    return %arg2, %arg1 : i32, i32
  }
  func.func @transform_2(%arg0: i32, %arg1: i32, %arg2: i32) -> (i32, i32) {
    %c0_i32 = arith.constant 0 : i32
    return %arg2, %arg1 : i32, i32
  }
  func.func @transform_3(%arg0: i32, %arg1: i32, %arg2: i32) -> (i32, i32) {
    %c0_i32 = arith.constant 0 : i32
    return %arg0, %arg1 : i32, i32
  }
}

</mosaic_0001>

<llo_original>
// kernel: tpu_custom_call.1
$region0: #{tpu_custom_call.1}
  #allocation0 [shape = 'u32[]', space=smem, size = 0x4, offset = 0x4, fixed_abs, tag = 'smem constant byte address 0x4 - core index']
  #allocation1 [shape = 'u32[144,128]{1,0:T(1,128)}', space=vmem, size = 0x12000, scoped, tag = 'internal scratch']
  #allocation2 [shape = 'f32[128,256]{1,0:T(8,128)}', space=vmem, size = 0x20000, scoped, tag = 'scratch operand']
  %s0 = inlined_call_operand.hbm [shape: bf16[128,1024], index: 0, kind: input, shape index: {}]
  %s1 = inlined_call_operand.hbm [shape: bf16[1024,512], index: 1, kind: input, shape index: {}]
  %s2 = inlined_call_operand.hbm [shape: s8[1024,512], index: 2, kind: input, shape index: {}]
  %s3 = inlined_call_operand.hbm [shape: f32[128,512], index: 3, kind: output, shape index: {}]
  %s4 = sld [smem:[#allocation0]]
  $region65: #{tpu_custom_call.1} parent=0
    _
  %s6 = ssub.s32 1, %s4
  %s7 = scalar_select 0, %s6, %s4
  $region1: #{tpu_custom_call.1} parent=0
    #allocation3 [shape = 'u8[262144]{0}', space=vmem, size = 0x40000, scoped, tag = 'input window, operand 0']
    #allocation4 [shape = 's32[2]{0}', space=sflag, size = 0x8, scoped, tag = 'scoped memory for tpu_custom_call.1']
    #allocation5 [shape = 's32[2]{0}', space=sflag, size = 0x8, scoped, tag = 'scoped memory for tpu_custom_call.1']
    #allocation6 [shape = 'u8[524288]{0}', space=vmem, size = 0x80000, scoped, tag = 'input window, operand 1']
    #allocation7 [shape = 's32[2]{0}', space=sflag, size = 0x8, scoped, tag = 'scoped memory for tpu_custom_call.1']
    #allocation8 [shape = 'u8[262144]{0}', space=vmem, size = 0x40000, scoped, tag = 'input window, operand 2']
    #allocation9 [shape = 'u8[262144]{0}', space=vmem, size = 0x40000, scoped, tag = 'output window, operand 0']
    %8 = vsyncpa [#allocation4], 0
    %s9 = scalar_lea.sflag [#allocation4], 1
    %10 = vsyncpa %s9, 0
    %11 = vsyncpa [#allocation7], 0
    %s12 = scalar_lea.sflag [#allocation7], 1
    %13 = vsyncpa %s12, 0
    %14 = vsyncpa [#allocation5], 0
    %s15 = scalar_lea.sflag [#allocation5], 1
    %16 = vsyncpa %s15, 0
    loop: start=0, step=1, limit=6
    $region2: #{tpu_custom_call.1} parent=1 // loop_pre_header
      _
    $region3: #{tpu_custom_call.1} parent=1 // loop_header
      %s18 = sphi 0, %s22
      %p19 = scmp.ge.s32.totalorder %s18, 6
      %s25 = sphi 0, %s44
      %s26 = sphi 0, %s40
      %s27 = sphi 0, %s36
      %s28 = sphi 0, %s25
      %s29 = sphi 0, %s26
      %s30 = sphi 0, %s27
      %s31 = sphi 0, %s28
      %s32 = sphi 0, %s29
      %s33 = sphi 0, %s30
      %s49 = sphi 0, %s51
      %s52 = sphi 0, %s49
      %s53 = sphi 0, %s52
      %s69 = sphi 0, %s53
      %s77 = sphi 0, %s79
      %s80 = sphi 0, %s77
      %s81 = sphi 0, %s80
      %s97 = sphi 0, %s81
      %s105 = sphi 0, %s107
      %s108 = sphi 0, %s105
      %s109 = sphi 0, %s108
      %s125 = sphi 0, %s109
      %s133 = sphi 0, %s135
      %s136 = sphi 0, %s133
      %s137 = sphi 0, %s136
      %s153 = sphi 0, %s137
    $region4: #{tpu_custom_call.1} parent=1 // loop_header_branch
      %21 = sbr.rel (%p19) target = $region8
    $region5: #{tpu_custom_call.1} parent=1 // loop_body
      %s23 = ssub.s32 %s18, 1
      %s24 = ssub.s32 %s18, 2
      %s34 = sadd.s32 1, %s27
      %p35 = scmp.ge.s32.totalorder %s34, 2
      %s36 = scalar_select %p35, 0, %s34
      %s37 = sadd.s32 1, %s26
      %s38 = scalar_select %p35, %s37, %s26
      %p39 = scmp.ge.s32.totalorder %s38, 2
      %s40 = scalar_select %p39, 0, %s38
      %s41 = sadd.s32 1, %s25
      %s42 = scalar_select %p39, %s41, %s25
      %p43 = scmp.ge.s32.totalorder %s42, 1
      %s44 = scalar_select %p43, 0, %s42
      %s45 = ssub.s32 %s25, %s44
      %s46 = ssub.s32 %s27, %s36
      %s47 = sor.u32 %s45, %s46
      %p48 = scmp.eq.s32.totalorder %s47, 0
      %s50 = sadd.s32 %s49, 1
      %s51 = scalar_select %p48, %s49, %s50
      %p54 = pneg %p48
      %p55 = scmp.eq.s32.totalorder %s18, 3
      %p56 = por %p54, %p55
      %p57 = scmp.ne.s32.totalorder %s49, %s52
      %p58 = scmp.eq.s32.totalorder %s18, 0
      %p59 = por %p57, %p58
      %p60 = scmp.ne.s32.totalorder %s49, %s52
      %p61 = scmp.eq.s32.totalorder %s23, 3
      %p62 = por %p60, %p61
      %p63 = scmp.ne.s32.totalorder %s52, %s53
      %p64 = scmp.eq.s32.totalorder %s23, 0
      %p65 = por %p63, %p64
      %p66 = scmp.ne.s32.totalorder %s52, %s53
      %p67 = scmp.eq.s32.totalorder %s24, 3
      %p68 = por %p66, %p67
      %p70 = scmp.ne.s32.totalorder %s53, %s69
      %p71 = scmp.eq.s32.totalorder %s24, 0
      %p72 = por %p70, %p71
      %s73 = ssub.s32 %s27, %s36
      %s74 = ssub.s32 %s26, %s40
      %s75 = sor.u32 %s73, %s74
      %p76 = scmp.eq.s32.totalorder %s75, 0
      %s78 = sadd.s32 %s77, 1
      %s79 = scalar_select %p76, %s77, %s78
      %p82 = pneg %p76
      %p83 = scmp.eq.s32.totalorder %s18, 3
      %p84 = por %p82, %p83
      %p85 = scmp.ne.s32.totalorder %s77, %s80
      %p86 = scmp.eq.s32.totalorder %s18, 0
      %p87 = por %p85, %p86
      %p88 = scmp.ne.s32.totalorder %s77, %s80
      %p89 = scmp.eq.s32.totalorder %s23, 3
      %p90 = por %p88, %p89
      %p91 = scmp.ne.s32.totalorder %s80, %s81
      %p92 = scmp.eq.s32.totalorder %s23, 0
      %p93 = por %p91, %p92
      %p94 = scmp.ne.s32.totalorder %s80, %s81
      %p95 = scmp.eq.s32.totalorder %s24, 3
      %p96 = por %p94, %p95
      %p98 = scmp.ne.s32.totalorder %s81, %s97
      %p99 = scmp.eq.s32.totalorder %s24, 0
      %p100 = por %p98, %p99
      %s101 = ssub.s32 %s27, %s36
      %s102 = ssub.s32 %s26, %s40
      %s103 = sor.u32 %s101, %s102
      %p104 = scmp.eq.s32.totalorder %s103, 0
      %s106 = sadd.s32 %s105, 1
      %s107 = scalar_select %p104, %s105, %s106
      %p110 = pneg %p104
      %p111 = scmp.eq.s32.totalorder %s18, 3
      %p112 = por %p110, %p111
      %p113 = scmp.ne.s32.totalorder %s105, %s108
      %p114 = scmp.eq.s32.totalorder %s18, 0
      %p115 = por %p113, %p114
      %p116 = scmp.ne.s32.totalorder %s105, %s108
      %p117 = scmp.eq.s32.totalorder %s23, 3
      %p118 = por %p116, %p117
      %p119 = scmp.ne.s32.totalorder %s108, %s109
      %p120 = scmp.eq.s32.totalorder %s23, 0
      %p121 = por %p119, %p120
      %p122 = scmp.ne.s32.totalorder %s108, %s109
      %p123 = scmp.eq.s32.totalorder %s24, 3
      %p124 = por %p122, %p123
      %p126 = scmp.ne.s32.totalorder %s109, %s125
      %p127 = scmp.eq.s32.totalorder %s24, 0
      %p128 = por %p126, %p127
      %s129 = ssub.s32 %s25, %s44
      %s130 = ssub.s32 %s26, %s40
      %s131 = sor.u32 %s129, %s130
      %p132 = scmp.eq.s32.totalorder %s131, 0
      %s134 = sadd.s32 %s133, 1
      %s135 = scalar_select %p132, %s133, %s134
      %p138 = pneg %p132
      %p139 = scmp.eq.s32.totalorder %s18, 3
      %p140 = por %p138, %p139
      %p141 = scmp.ne.s32.totalorder %s133, %s136
      %p142 = scmp.eq.s32.totalorder %s18, 0
      %p143 = por %p141, %p142
      %p144 = scmp.ne.s32.totalorder %s133, %s136
      %p145 = scmp.eq.s32.totalorder %s23, 3
      %p146 = por %p144, %p145
      %p147 = scmp.ne.s32.totalorder %s136, %s137
      %p148 = scmp.eq.s32.totalorder %s23, 0
      %p149 = por %p147, %p148
      %p150 = scmp.ne.s32.totalorder %s136, %s137
      %p151 = scmp.eq.s32.totalorder %s24, 3
      %p152 = por %p150, %p151
      %p154 = scmp.ne.s32.totalorder %s137, %s153
      %p155 = scmp.eq.s32.totalorder %s24, 0
      %p156 = por %p154, %p155
      %p157 = scmp.le.s32.totalorder 1, %s18
      %p158 = scmp.lt.s32.totalorder %s18, 5
      %p159 = pnand %p157, %p158
      %p160 = pneg %p159
      // Predicated region
      $region9: #{tpu_custom_call.1} parent=5 // pred_check
        _
      $region10: #{tpu_custom_call.1} parent=5 // pred_check_branch
        %162 = sbr.rel (%p159) target = $region12
      $region11: #{tpu_custom_call.1} parent=5 // pred_region
        %s163 = ssub.s32 %s18, 1
      $region12: #{tpu_custom_call.1} parent=5 // pred_fallthru
        _
      %p164 = scmp.lt.s32.totalorder %s18, 4
      // Predicated region
      $region13: #{tpu_custom_call.1} parent=5 // pred_check
        %p165 = pneg %p164
      $region14: #{tpu_custom_call.1} parent=5 // pred_check_branch
        %167 = sbr.rel (%p165) target = $region16
      $region15: #{tpu_custom_call.1} parent=5 // pred_region
        // Predicated region
        $region17: #{tpu_custom_call.1} parent=15 // pred_check
          %p168 = pneg %p59
        $region18: #{tpu_custom_call.1} parent=15 // pred_check_branch
          %170 = sbr.rel (%p168) target = $region20
        $region19: #{tpu_custom_call.1} parent=15 // pred_region
          %s171 = sand.u32 %s49, 1
          %s172 = scalar_lea.sflag [#allocation4], %s171
          %s173 = sand.u32 %s49, 1
          %s174 = smul.addr %s173, 256
          %s175 = scalar_lea.vmem [#allocation3], %s174
          %s176 = smul.u32 16, %s25
          %s177 = smul.u32 4, %s27
          %s179 = ssub.s32 4096, 4096
          %180 = vsyncadd %s172, %s179
          %s181 = smul.addr %s176, 8
          %s182 = sadd.s32 %s177, %s181
          %s183 = smul.addr %s182, 64
          %s184 = scalar_lea.hbm %s0, %s183
          %s185 = sshll.u32 %s175, 4
          %s186 = int_to_ptr.vmem [resolvable:$true] %s185
          %191 = dma.hbm_to_vmem [thread:$0]  %s184, 4096, %s186, %s172, 512, 256, 16
        $region20: #{tpu_custom_call.1} parent=15 // pred_fallthru
          _
        // Predicated region
        $region21: #{tpu_custom_call.1} parent=15 // pred_check
          %p192 = pneg %p87
        $region22: #{tpu_custom_call.1} parent=15 // pred_check_branch
          %194 = sbr.rel (%p192) target = $region24
        $region23: #{tpu_custom_call.1} parent=15 // pred_region
          %s195 = sand.u32 %s18, 1
          %s196 = scalar_lea.sflag [#allocation7], %s195
          %s197 = sand.u32 %s77, 1
          %s198 = smul.addr %s197, 512
          %s199 = scalar_lea.vmem [#allocation6], %s198
          %s200 = smul.u32 64, %s27
          %s201 = smul.u32 2, %s26
          %s203 = ssub.s32 8192, 8192
          %204 = vsyncadd %s196, %s203
          %s205 = smul.addr %s200, 4
          %s206 = sadd.s32 %s201, %s205
          %s207 = smul.addr %s206, 64
          %s208 = scalar_lea.hbm %s1, %s207
          %s209 = sshll.u32 %s199, 4
          %s210 = int_to_ptr.vmem [resolvable:$true] %s209
          %215 = dma.hbm_to_vmem [thread:$0]  %s208, 8192, %s210, %s196, 256, 128, 8
        $region24: #{tpu_custom_call.1} parent=15 // pred_fallthru
          _
        // Predicated region
        $region25: #{tpu_custom_call.1} parent=15 // pred_check
          %p216 = pneg %p115
        $region26: #{tpu_custom_call.1} parent=15 // pred_check_branch
          %218 = sbr.rel (%p216) target = $region28
        $region27: #{tpu_custom_call.1} parent=15 // pred_region
          %s219 = sand.u32 %s18, 1
          %s220 = scalar_lea.sflag [#allocation7], %s219
          %s221 = sand.u32 %s105, 1
          %s222 = smul.addr %s221, 256
          %s223 = scalar_lea.vmem [#allocation8], %s222
          %s224 = smul.u32 16, %s27
          %s225 = smul.u32 2, %s26
          %s227 = ssub.s32 4096, 4096
          %228 = vsyncadd %s220, %s227
          %s229 = smul.addr %s224, 4
          %s230 = sadd.s32 %s225, %s229
          %s231 = smul.addr %s230, 128
          %s232 = scalar_lea.hbm %s2, %s231
          %s233 = sshll.u32 %s223, 4
          %s234 = int_to_ptr.vmem [resolvable:$true] %s233
          %239 = dma.hbm_to_vmem [thread:$0]  %s232, 4096, %s234, %s220, 512, 256, 16
        $region28: #{tpu_custom_call.1} parent=15 // pred_fallthru
          _
      $region16: #{tpu_custom_call.1} parent=5 // pred_fallthru
        _
      %p240 = scmp.le.s32.totalorder 1, %s18
      %p241 = scmp.lt.s32.totalorder %s18, 5
      %p242 = pnand %p240, %p241
      %p243 = pneg %p242
      // Predicated region
      $region29: #{tpu_custom_call.1} parent=5 // pred_check
        _
      $region30: #{tpu_custom_call.1} parent=5 // pred_check_branch
        %245 = sbr.rel (%p242) target = $region32
      $region31: #{tpu_custom_call.1} parent=5 // pred_region
        %s246 = ssub.s32 %s18, 1
        %s247 = sand.u32 %s52, 1
        %s248 = scalar_lea.sflag [#allocation4], %s247
        %s249 = sand.u32 %s52, 1
        %s250 = smul.addr %s249, 256
        %s251 = scalar_lea.vmem [#allocation3], %s250
        // Predicated region
        $region33: #{tpu_custom_call.1} parent=31 // pred_check
          %p252 = pneg %p65
        $region34: #{tpu_custom_call.1} parent=31 // pred_check_branch
          %254 = sbr.rel (%p252) target = $region36
        $region35: #{tpu_custom_call.1} parent=31 // pred_region
          %255 = dma.done %s248, 4096
        $region36: #{tpu_custom_call.1} parent=31 // pred_fallthru
          _
        %s256 = sand.u32 %s23, 1
        %s257 = scalar_lea.sflag [#allocation7], %s256
        %s258 = sand.u32 %s80, 1
        %s259 = smul.addr %s258, 512
        %s260 = scalar_lea.vmem [#allocation6], %s259
        // Predicated region
        $region37: #{tpu_custom_call.1} parent=31 // pred_check
          %p261 = pneg %p93
        $region38: #{tpu_custom_call.1} parent=31 // pred_check_branch
          %263 = sbr.rel (%p261) target = $region40
        $region39: #{tpu_custom_call.1} parent=31 // pred_region
          %264 = dma.done %s257, 8192
        $region40: #{tpu_custom_call.1} parent=31 // pred_fallthru
          _
        %s265 = sand.u32 %s23, 1
        %s266 = scalar_lea.sflag [#allocation7], %s265
        %s267 = sand.u32 %s108, 1
        %s268 = smul.addr %s267, 256
        %s269 = scalar_lea.vmem [#allocation8], %s268
        // Predicated region
        $region41: #{tpu_custom_call.1} parent=31 // pred_check
          %p270 = pneg %p121
        $region42: #{tpu_custom_call.1} parent=31 // pred_check_branch
          %272 = sbr.rel (%p270) target = $region44
        $region43: #{tpu_custom_call.1} parent=31 // pred_region
          %273 = dma.done %s266, 4096
        $region44: #{tpu_custom_call.1} parent=31 // pred_fallthru
          _
        %s274 = sand.u32 %s52, 1
        %s275 = scalar_lea.sflag [#allocation4], %s274
        %s276 = sand.u32 %s52, 1
        %s277 = smul.addr %s276, 256
        %s278 = scalar_lea.vmem [#allocation3], %s277
        %p279 = pneg %p65
        %p280 = pneg %p62
        %s281 = sand.u32 %s23, 1
        %s282 = scalar_lea.sflag [#allocation7], %s281
        %s283 = sand.u32 %s80, 1
        %s284 = smul.addr %s283, 512
        %s285 = scalar_lea.vmem [#allocation6], %s284
        %p286 = pneg %p93
        %p287 = pneg %p90
        %s288 = sand.u32 %s23, 1
        %s289 = scalar_lea.sflag [#allocation7], %s288
        %s290 = sand.u32 %s108, 1
        %s291 = smul.addr %s290, 256
        %s292 = scalar_lea.vmem [#allocation8], %s291
        %p293 = pneg %p121
        %p294 = pneg %p118
        %p295 = pneg %p149
        %p296 = pneg %p146
        %s297 = sand.u32 %s136, 1
        %s298 = scalar_lea.sflag [#allocation5], %s297
        %s299 = sand.u32 %s136, 1
        %s300 = smul.addr %s299, 256
        %s301 = scalar_lea.vmem [#allocation9], %s300
        %s302 = smul.u32 16, %s28
        %s303 = smul.u32 4, %s30
        %s304 = smul.u32 64, %s30
        %s305 = smul.u32 2, %s29
        %s306 = smul.u32 16, %s30
        %s307 = smul.u32 2, %s29
        %s308 = smul.u32 16, %s28
        %s309 = smul.u32 2, %s29
        %p314 = scmp.eq.s32.totalorder %s30, 0
        // Predicated region
        $region45: #{tpu_custom_call.1} parent=31 // pred_check
          %p315 = pneg %p314
        $region46: #{tpu_custom_call.1} parent=31 // pred_check_branch
          %317 = sbr.rel (%p315) target = $region48
        $region47: #{tpu_custom_call.1} parent=31 // pred_region
          %318 = vst [vmem:[#allocation2] sm:$0xff] 0.0
          %319 = vst [vmem:[#allocation2 + $0x8] sm:$0xff] 0.0
          %320 = vst [vmem:[#allocation2 + $0x10] sm:$0xff] 0.0
          %321 = vst [vmem:[#allocation2 + $0x18] sm:$0xff] 0.0
          %322 = vst [vmem:[#allocation2 + $0x20] sm:$0xff] 0.0
          %323 = vst [vmem:[#allocation2 + $0x28] sm:$0xff] 0.0
          %324 = vst [vmem:[#allocation2 + $0x30] sm:$0xff] 0.0
          %325 = vst [vmem:[#allocation2 + $0x38] sm:$0xff] 0.0
          %326 = vst [vmem:[#allocation2 + $0x40] sm:$0xff] 0.0
          %327 = vst [vmem:[#allocation2 + $0x48] sm:$0xff] 0.0
          %328 = vst [vmem:[#allocation2 + $0x50] sm:$0xff] 0.0
          %329 = vst [vmem:[#allocation2 + $0x58] sm:$0xff] 0.0
          %330 = vst [vmem:[#allocation2 + $0x60] sm:$0xff] 0.0
          %331 = vst [vmem:[#allocation2 + $0x68] sm:$0xff] 0.0
          %332 = vst [vmem:[#allocation2 + $0x70] sm:$0xff] 0.0
          %333 = vst [vmem:[#allocation2 + $0x78] sm:$0xff] 0.0
          %334 = vst [vmem:[#allocation2 + $0x80] sm:$0xff] 0.0
          %335 = vst [vmem:[#allocation2 + $0x88] sm:$0xff] 0.0
          %336 = vst [vmem:[#allocation2 + $0x90] sm:$0xff] 0.0
          %337 = vst [vmem:[#allocation2 + $0x98] sm:$0xff] 0.0
          %338 = vst [vmem:[#allocation2 + $0xa0] sm:$0xff] 0.0
          %339 = vst [vmem:[#allocation2 + $0xa8] sm:$0xff] 0.0
          %340 = vst [vmem:[#allocation2 + $0xb0] sm:$0xff] 0.0
          %341 = vst [vmem:[#allocation2 + $0xb8] sm:$0xff] 0.0
          %342 = vst [vmem:[#allocation2 + $0xc0] sm:$0xff] 0.0
          %343 = vst [vmem:[#allocation2 + $0xc8] sm:$0xff] 0.0
          %344 = vst [vmem:[#allocation2 + $0xd0] sm:$0xff] 0.0
          %345 = vst [vmem:[#allocation2 + $0xd8] sm:$0xff] 0.0
          %346 = vst [vmem:[#allocation2 + $0xe0] sm:$0xff] 0.0
          %347 = vst [vmem:[#allocation2 + $0xe8] sm:$0xff] 0.0
          %348 = vst [vmem:[#allocation2 + $0xf0] sm:$0xff] 0.0
          %349 = vst [vmem:[#allocation2 + $0xf8] sm:$0xff] 0.0
        $region48: #{tpu_custom_call.1} parent=31 // pred_fallthru
          _
        %v350 = vld [vmem:[%s260] sm:$0xff]
        %v351 = vld [vmem:[%s260 + $0x8] sm:$0xff]
        %v352 = vld [vmem:[%s260 + $0x10] sm:$0xff]
        %v353 = vld [vmem:[%s260 + $0x18] sm:$0xff]
        %v354 = vld [vmem:[%s260 + $0x20] sm:$0xff]
        %v355 = vld [vmem:[%s260 + $0x28] sm:$0xff]
        %v356 = vld [vmem:[%s260 + $0x30] sm:$0xff]
        %v357 = vld [vmem:[%s260 + $0x38] sm:$0xff]
        %v358 = vld [vmem:[%s260 + $0x40] sm:$0xff]
        %v359 = vld [vmem:[%s260 + $0x48] sm:$0xff]
        %v360 = vld [vmem:[%s260 + $0x50] sm:$0xff]
        %v361 = vld [vmem:[%s260 + $0x58] sm:$0xff]
        %v362 = vld [vmem:[%s260 + $0x60] sm:$0xff]
        %v363 = vld [vmem:[%s260 + $0x68] sm:$0xff]
        %v364 = vld [vmem:[%s260 + $0x70] sm:$0xff]
        %v365 = vld [vmem:[%s260 + $0x78] sm:$0xff]
        %v366 = vld [vmem:[%s260 + $0x80] sm:$0xff]
        %v367 = vld [vmem:[%s260 + $0x88] sm:$0xff]
        %v368 = vld [vmem:[%s260 + $0x90] sm:$0xff]
        %v369 = vld [vmem:[%s260 + $0x98] sm:$0xff]
        %v370 = vld [vmem:[%s260 + $0xa0] sm:$0xff]
        %v371 = vld [vmem:[%s260 + $0xa8] sm:$0xff]
        %v372 = vld [vmem:[%s260 + $0xb0] sm:$0xff]
        %v373 = vld [vmem:[%s260 + $0xb8] sm:$0xff]
        %v374 = vld [vmem:[%s260 + $0xc0] sm:$0xff]
        %v375 = vld [vmem:[%s260 + $0xc8] sm:$0xff]
        %v376 = vld [vmem:[%s260 + $0xd0] sm:$0xff]
        %v377 = vld [vmem:[%s260 + $0xd8] sm:$0xff]
        %v378 = vld [vmem:[%s260 + $0xe0] sm:$0xff]
        %v379 = vld [vmem:[%s260 + $0xe8] sm:$0xff]
        %v380 = vld [vmem:[%s260 + $0xf0] sm:$0xff]
        %v381 = vld [vmem:[%s260 + $0xf8] sm:$0xff]
        %v382 = vld [vmem:[%s260 + $0x100] sm:$0xff]
        %v383 = vld [vmem:[%s260 + $0x108] sm:$0xff]
        %v384 = vld [vmem:[%s260 + $0x110] sm:$0xff]
        %v385 = vld [vmem:[%s260 + $0x118] sm:$0xff]
        %v386 = vld [vmem:[%s260 + $0x120] sm:$0xff]
        %v387 = vld [vmem:[%s260 + $0x128] sm:$0xff]
        %v388 = vld [vmem:[%s260 + $0x130] sm:$0xff]
        %v389 = vld [vmem:[%s260 + $0x138] sm:$0xff]
        %v390 = vld [vmem:[%s260 + $0x140] sm:$0xff]
        %v391 = vld [vmem:[%s260 + $0x148] sm:$0xff]
        %v392 = vld [vmem:[%s260 + $0x150] sm:$0xff]
        %v393 = vld [vmem:[%s260 + $0x158] sm:$0xff]
        %v394 = vld [vmem:[%s260 + $0x160] sm:$0xff]
        %v395 = vld [vmem:[%s260 + $0x168] sm:$0xff]
        %v396 = vld [vmem:[%s260 + $0x170] sm:$0xff]
        %v397 = vld [vmem:[%s260 + $0x178] sm:$0xff]
        %v398 = vld [vmem:[%s260 + $0x180] sm:$0xff]
        %v399 = vld [vmem:[%s260 + $0x188] sm:$0xff]
        %v400 = vld [vmem:[%s260 + $0x190] sm:$0xff]
        %v401 = vld [vmem:[%s260 + $0x198] sm:$0xff]
        %v402 = vld [vmem:[%s260 + $0x1a0] sm:$0xff]
        %v403 = vld [vmem:[%s260 + $0x1a8] sm:$0xff]
        %v404 = vld [vmem:[%s260 + $0x1b0] sm:$0xff]
        %v405 = vld [vmem:[%s260 + $0x1b8] sm:$0xff]
        %v406 = vld [vmem:[%s260 + $0x1c0] sm:$0xff]
        %v407 = vld [vmem:[%s260 + $0x1c8] sm:$0xff]
        %v408 = vld [vmem:[%s260 + $0x1d0] sm:$0xff]
        %v409 = vld [vmem:[%s260 + $0x1d8] sm:$0xff]
        %v410 = vld [vmem:[%s260 + $0x1e0] sm:$0xff]
        %v411 = vld [vmem:[%s260 + $0x1e8] sm:$0xff]
        %v412 = vld [vmem:[%s260 + $0x1f0] sm:$0xff]
        %v413 = vld [vmem:[%s260 + $0x1f8] sm:$0xff]
        %v414 = vld [vmem:[%s269] sm:$0xff]
        %v415 = vld [vmem:[%s269 + $0x8] sm:$0xff]
        %v416 = vld [vmem:[%s269 + $0x10] sm:$0xff]
        %v417 = vld [vmem:[%s269 + $0x18] sm:$0xff]
        %v418 = vld [vmem:[%s269 + $0x20] sm:$0xff]
        %v419 = vld [vmem:[%s269 + $0x28] sm:$0xff]
        %v420 = vld [vmem:[%s269 + $0x30] sm:$0xff]
        %v421 = vld [vmem:[%s269 + $0x38] sm:$0xff]
        %v422 = vld [vmem:[%s269 + $0x40] sm:$0xff]
        %v423 = vld [vmem:[%s269 + $0x48] sm:$0xff]
        %v424 = vld [vmem:[%s269 + $0x50] sm:$0xff]
        %v425 = vld [vmem:[%s269 + $0x58] sm:$0xff]
        %v426 = vld [vmem:[%s269 + $0x60] sm:$0xff]
        %v427 = vld [vmem:[%s269 + $0x68] sm:$0xff]
        %v428 = vld [vmem:[%s269 + $0x70] sm:$0xff]
        %v429 = vld [vmem:[%s269 + $0x78] sm:$0xff]
        %v430 = vld [vmem:[%s269 + $0x80] sm:$0xff]
        %v431 = vld [vmem:[%s269 + $0x88] sm:$0xff]
        %v432 = vld [vmem:[%s269 + $0x90] sm:$0xff]
        %v433 = vld [vmem:[%s269 + $0x98] sm:$0xff]
        %v434 = vld [vmem:[%s269 + $0xa0] sm:$0xff]
        %v435 = vld [vmem:[%s269 + $0xa8] sm:$0xff]
        %v436 = vld [vmem:[%s269 + $0xb0] sm:$0xff]
        %v437 = vld [vmem:[%s269 + $0xb8] sm:$0xff]
        %v438 = vld [vmem:[%s269 + $0xc0] sm:$0xff]
        %v439 = vld [vmem:[%s269 + $0xc8] sm:$0xff]
        %v440 = vld [vmem:[%s269 + $0xd0] sm:$0xff]
        %v441 = vld [vmem:[%s269 + $0xd8] sm:$0xff]
        %v442 = vld [vmem:[%s269 + $0xe0] sm:$0xff]
        %v443 = vld [vmem:[%s269 + $0xe8] sm:$0xff]
        %v444 = vld [vmem:[%s269 + $0xf0] sm:$0xff]
        %v445 = vld [vmem:[%s269 + $0xf8] sm:$0xff]
        %vm446 = vnez %v414
        %vm447 = vnez %v415
        %vm448 = vnez %v416
        %vm449 = vnez %v417
        %vm450 = vnez %v418
        %vm451 = vnez %v419
        %vm452 = vnez %v420
        %vm453 = vnez %v421
        %vm454 = vnez %v422
        %vm455 = vnez %v423
        %vm456 = vnez %v424
        %vm457 = vnez %v425
        %vm458 = vnez %v426
        %vm459 = vnez %v427
        %vm460 = vnez %v428
        %vm461 = vnez %v429
        %vm462 = vnez %v430
        %vm463 = vnez %v431
        %vm464 = vnez %v432
        %vm465 = vnez %v433
        %vm466 = vnez %v434
        %vm467 = vnez %v435
        %vm468 = vnez %v436
        %vm469 = vnez %v437
        %vm470 = vnez %v438
        %vm471 = vnez %v439
        %vm472 = vnez %v440
        %vm473 = vnez %v441
        %vm474 = vnez %v442
        %vm475 = vnez %v443
        %vm476 = vnez %v444
        %vm477 = vnez %v445
        %v478 = vsel %vm446, 16843009, 0
        %v479 = vsel %vm447, 16843009, 0
        %v480 = vsel %vm448, 16843009, 0
        %v481 = vsel %vm449, 16843009, 0
        %v482 = vsel %vm450, 16843009, 0
        %v483 = vsel %vm451, 16843009, 0
        %v484 = vsel %vm452, 16843009, 0
        %v485 = vsel %vm453, 16843009, 0
        %v486 = vsel %vm454, 16843009, 0
        %v487 = vsel %vm455, 16843009, 0
        %v488 = vsel %vm456, 16843009, 0
        %v489 = vsel %vm457, 16843009, 0
        %v490 = vsel %vm458, 16843009, 0
        %v491 = vsel %vm459, 16843009, 0
        %v492 = vsel %vm460, 16843009, 0
        %v493 = vsel %vm461, 16843009, 0
        %v494 = vsel %vm462, 16843009, 0
        %v495 = vsel %vm463, 16843009, 0
        %v496 = vsel %vm464, 16843009, 0
        %v497 = vsel %vm465, 16843009, 0
        %v498 = vsel %vm466, 16843009, 0
        %v499 = vsel %vm467, 16843009, 0
        %v500 = vsel %vm468, 16843009, 0
        %v501 = vsel %vm469, 16843009, 0
        %v502 = vsel %vm470, 16843009, 0
        %v503 = vsel %vm471, 16843009, 0
        %v504 = vsel %vm472, 16843009, 0
        %v505 = vsel %vm473, 16843009, 0
        %v506 = vsel %vm474, 16843009, 0
        %v507 = vsel %vm475, 16843009, 0
        %v508 = vsel %vm476, 16843009, 0
        %v509 = vsel %vm477, 16843009, 0
        %v510 = vunpack.c.0.s8 %v478
        %v511 = vunpack.c.0.s8 %v479
        %v512 = vunpack.c.1.s8 %v478
        %v513 = vunpack.c.1.s8 %v479
        %v514 = vunpack.c.2.s8 %v478
        %v515 = vunpack.c.2.s8 %v479
        %v516 = vunpack.c.3.s8 %v478
        %v517 = vunpack.c.3.s8 %v479
        %v518 = vunpack.c.0.s8 %v480
        %v519 = vunpack.c.0.s8 %v481
        %v520 = vunpack.c.1.s8 %v480
        %v521 = vunpack.c.1.s8 %v481
        %v522 = vunpack.c.2.s8 %v480
        %v523 = vunpack.c.2.s8 %v481
        %v524 = vunpack.c.3.s8 %v480
        %v525 = vunpack.c.3.s8 %v481
        %v526 = vunpack.c.0.s8 %v482
        %v527 = vunpack.c.0.s8 %v483
        %v528 = vunpack.c.1.s8 %v482
        %v529 = vunpack.c.1.s8 %v483
        %v530 = vunpack.c.2.s8 %v482
        %v531 = vunpack.c.2.s8 %v483
        %v532 = vunpack.c.3.s8 %v482
        %v533 = vunpack.c.3.s8 %v483
        %v534 = vunpack.c.0.s8 %v484
        %v535 = vunpack.c.0.s8 %v485
        %v536 = vunpack.c.1.s8 %v484
        %v537 = vunpack.c.1.s8 %v485
        %v538 = vunpack.c.2.s8 %v484
        %v539 = vunpack.c.2.s8 %v485
        %v540 = vunpack.c.3.s8 %v484
        %v541 = vunpack.c.3.s8 %v485
        %v542 = vunpack.c.0.s8 %v486
        %v543 = vunpack.c.0.s8 %v487
        %v544 = vunpack.c.1.s8 %v486
        %v545 = vunpack.c.1.s8 %v487
        %v546 = vunpack.c.2.s8 %v486
        %v547 = vunpack.c.2.s8 %v487
        %v548 = vunpack.c.3.s8 %v486
        %v549 = vunpack.c.3.s8 %v487
        %v550 = vunpack.c.0.s8 %v488
        %v551 = vunpack.c.0.s8 %v489
        %v552 = vunpack.c.1.s8 %v488
        %v553 = vunpack.c.1.s8 %v489
        %v554 = vunpack.c.2.s8 %v488
        %v555 = vunpack.c.2.s8 %v489
        %v556 = vunpack.c.3.s8 %v488
        %v557 = vunpack.c.3.s8 %v489
        %v558 = vunpack.c.0.s8 %v490
        %v559 = vunpack.c.0.s8 %v491
        %v560 = vunpack.c.1.s8 %v490
        %v561 = vunpack.c.1.s8 %v491
        %v562 = vunpack.c.2.s8 %v490
        %v563 = vunpack.c.2.s8 %v491
        %v564 = vunpack.c.3.s8 %v490
        %v565 = vunpack.c.3.s8 %v491
        %v566 = vunpack.c.0.s8 %v492
        %v567 = vunpack.c.0.s8 %v493
        %v568 = vunpack.c.1.s8 %v492
        %v569 = vunpack.c.1.s8 %v493
        %v570 = vunpack.c.2.s8 %v492
        %v571 = vunpack.c.2.s8 %v493
        %v572 = vunpack.c.3.s8 %v492
        %v573 = vunpack.c.3.s8 %v493
        %v574 = vunpack.c.0.s8 %v494
        %v575 = vunpack.c.0.s8 %v495
        %v576 = vunpack.c.1.s8 %v494
        %v577 = vunpack.c.1.s8 %v495
        %v578 = vunpack.c.2.s8 %v494
        %v579 = vunpack.c.2.s8 %v495
        %v580 = vunpack.c.3.s8 %v494
        %v581 = vunpack.c.3.s8 %v495
        %v582 = vunpack.c.0.s8 %v496
        %v583 = vunpack.c.0.s8 %v497
        %v584 = vunpack.c.1.s8 %v496
        %v585 = vunpack.c.1.s8 %v497
        %v586 = vunpack.c.2.s8 %v496
        %v587 = vunpack.c.2.s8 %v497
        %v588 = vunpack.c.3.s8 %v496
        %v589 = vunpack.c.3.s8 %v497
        %v590 = vunpack.c.0.s8 %v498
        %v591 = vunpack.c.0.s8 %v499
        %v592 = vunpack.c.1.s8 %v498
        %v593 = vunpack.c.1.s8 %v499
        %v594 = vunpack.c.2.s8 %v498
        %v595 = vunpack.c.2.s8 %v499
        %v596 = vunpack.c.3.s8 %v498
        %v597 = vunpack.c.3.s8 %v499
        %v598 = vunpack.c.0.s8 %v500
        %v599 = vunpack.c.0.s8 %v501
        %v600 = vunpack.c.1.s8 %v500
        %v601 = vunpack.c.1.s8 %v501
        %v602 = vunpack.c.2.s8 %v500
        %v603 = vunpack.c.2.s8 %v501
        %v604 = vunpack.c.3.s8 %v500
        %v605 = vunpack.c.3.s8 %v501
        %v606 = vunpack.c.0.s8 %v502
        %v607 = vunpack.c.0.s8 %v503
        %v608 = vunpack.c.1.s8 %v502
        %v609 = vunpack.c.1.s8 %v503
        %v610 = vunpack.c.2.s8 %v502
        %v611 = vunpack.c.2.s8 %v503
        %v612 = vunpack.c.3.s8 %v502
        %v613 = vunpack.c.3.s8 %v503
        %v614 = vunpack.c.0.s8 %v504
        %v615 = vunpack.c.0.s8 %v505
        %v616 = vunpack.c.1.s8 %v504
        %v617 = vunpack.c.1.s8 %v505
        %v618 = vunpack.c.2.s8 %v504
        %v619 = vunpack.c.2.s8 %v505
        %v620 = vunpack.c.3.s8 %v504
        %v621 = vunpack.c.3.s8 %v505
        %v622 = vunpack.c.0.s8 %v506
        %v623 = vunpack.c.0.s8 %v507
        %v624 = vunpack.c.1.s8 %v506
        %v625 = vunpack.c.1.s8 %v507
        %v626 = vunpack.c.2.s8 %v506
        %v627 = vunpack.c.2.s8 %v507
        %v628 = vunpack.c.3.s8 %v506
        %v629 = vunpack.c.3.s8 %v507
        %v630 = vunpack.c.0.s8 %v508
        %v631 = vunpack.c.0.s8 %v509
        %v632 = vunpack.c.1.s8 %v508
        %v633 = vunpack.c.1.s8 %v509
        %v634 = vunpack.c.2.s8 %v508
        %v635 = vunpack.c.2.s8 %v509
        %v636 = vunpack.c.3.s8 %v508
        %v637 = vunpack.c.3.s8 %v509
        %v638 = vpack.c.b16 %v511, %v510
        %v639 = vpack.c.b8 %v638, %v638
        %v640 = vpack.c.b16 %v513, %v512
        %v641 = vpack.c.b8 %v640, %v640
        %v642 = vpack.c.b16 %v515, %v514
        %v643 = vpack.c.b8 %v642, %v642
        %v644 = vpack.c.b16 %v517, %v516
        %v645 = vpack.c.b8 %v644, %v644
        %v646 = vpack.c.b16 %v519, %v518
        %v647 = vpack.c.b8 %v646, %v646
        %v648 = vpack.c.b16 %v521, %v520
        %v649 = vpack.c.b8 %v648, %v648
        %v650 = vpack.c.b16 %v523, %v522
        %v651 = vpack.c.b8 %v650, %v650
        %v652 = vpack.c.b16 %v525, %v524
        %v653 = vpack.c.b8 %v652, %v652
        %v654 = vpack.c.b16 %v527, %v526
        %v655 = vpack.c.b8 %v654, %v654
        %v656 = vpack.c.b16 %v529, %v528
        %v657 = vpack.c.b8 %v656, %v656
        %v658 = vpack.c.b16 %v531, %v530
        %v659 = vpack.c.b8 %v658, %v658
        %v660 = vpack.c.b16 %v533, %v532
        %v661 = vpack.c.b8 %v660, %v660
        %v662 = vpack.c.b16 %v535, %v534
        %v663 = vpack.c.b8 %v662, %v662
        %v664 = vpack.c.b16 %v537, %v536
        %v665 = vpack.c.b8 %v664, %v664
        %v666 = vpack.c.b16 %v539, %v538
        %v667 = vpack.c.b8 %v666, %v666
        %v668 = vpack.c.b16 %v541, %v540
        %v669 = vpack.c.b8 %v668, %v668
        %v670 = vpack.c.b16 %v543, %v542
        %v671 = vpack.c.b8 %v670, %v670
        %v672 = vpack.c.b16 %v545, %v544
        %v673 = vpack.c.b8 %v672, %v672
        %v674 = vpack.c.b16 %v547, %v546
        %v675 = vpack.c.b8 %v674, %v674
        %v676 = vpack.c.b16 %v549, %v548
        %v677 = vpack.c.b8 %v676, %v676
        %v678 = vpack.c.b16 %v551, %v550
        %v679 = vpack.c.b8 %v678, %v678
        %v680 = vpack.c.b16 %v553, %v552
        %v681 = vpack.c.b8 %v680, %v680
        %v682 = vpack.c.b16 %v555, %v554
        %v683 = vpack.c.b8 %v682, %v682
        %v684 = vpack.c.b16 %v557, %v556
        %v685 = vpack.c.b8 %v684, %v684
        %v686 = vpack.c.b16 %v559, %v558
        %v687 = vpack.c.b8 %v686, %v686
        %v688 = vpack.c.b16 %v561, %v560
        %v689 = vpack.c.b8 %v688, %v688
        %v690 = vpack.c.b16 %v563, %v562
        %v691 = vpack.c.b8 %v690, %v690
        %v692 = vpack.c.b16 %v565, %v564
        %v693 = vpack.c.b8 %v692, %v692
        %v694 = vpack.c.b16 %v567, %v566
        %v695 = vpack.c.b8 %v694, %v694
        %v696 = vpack.c.b16 %v569, %v568
        %v697 = vpack.c.b8 %v696, %v696
        %v698 = vpack.c.b16 %v571, %v570
        %v699 = vpack.c.b8 %v698, %v698
        %v700 = vpack.c.b16 %v573, %v572
        %v701 = vpack.c.b8 %v700, %v700
        %v702 = vpack.c.b16 %v575, %v574
        %v703 = vpack.c.b8 %v702, %v702
        %v704 = vpack.c.b16 %v577, %v576
        %v705 = vpack.c.b8 %v704, %v704
        %v706 = vpack.c.b16 %v579, %v578
        %v707 = vpack.c.b8 %v706, %v706
        %v708 = vpack.c.b16 %v581, %v580
        %v709 = vpack.c.b8 %v708, %v708
        %v710 = vpack.c.b16 %v583, %v582
        %v711 = vpack.c.b8 %v710, %v710
        %v712 = vpack.c.b16 %v585, %v584
        %v713 = vpack.c.b8 %v712, %v712
        %v714 = vpack.c.b16 %v587, %v586
        %v715 = vpack.c.b8 %v714, %v714
        %v716 = vpack.c.b16 %v589, %v588
        %v717 = vpack.c.b8 %v716, %v716
        %v718 = vpack.c.b16 %v591, %v590
        %v719 = vpack.c.b8 %v718, %v718
        %v720 = vpack.c.b16 %v593, %v592
        %v721 = vpack.c.b8 %v720, %v720
        %v722 = vpack.c.b16 %v595, %v594
        %v723 = vpack.c.b8 %v722, %v722
        %v724 = vpack.c.b16 %v597, %v596
        %v725 = vpack.c.b8 %v724, %v724
        %v726 = vpack.c.b16 %v599, %v598
        %v727 = vpack.c.b8 %v726, %v726
        %v728 = vpack.c.b16 %v601, %v600
        %v729 = vpack.c.b8 %v728, %v728
        %v730 = vpack.c.b16 %v603, %v602
        %v731 = vpack.c.b8 %v730, %v730
        %v732 = vpack.c.b16 %v605, %v604
        %v733 = vpack.c.b8 %v732, %v732
        %v734 = vpack.c.b16 %v607, %v606
        %v735 = vpack.c.b8 %v734, %v734
        %v736 = vpack.c.b16 %v609, %v608
        %v737 = vpack.c.b8 %v736, %v736
        %v738 = vpack.c.b16 %v611, %v610
        %v739 = vpack.c.b8 %v738, %v738
        %v740 = vpack.c.b16 %v613, %v612
        %v741 = vpack.c.b8 %v740, %v740
        %v742 = vpack.c.b16 %v615, %v614
        %v743 = vpack.c.b8 %v742, %v742
        %v744 = vpack.c.b16 %v617, %v616
        %v745 = vpack.c.b8 %v744, %v744
        %v746 = vpack.c.b16 %v619, %v618
        %v747 = vpack.c.b8 %v746, %v746
        %v748 = vpack.c.b16 %v621, %v620
        %v749 = vpack.c.b8 %v748, %v748
        %v750 = vpack.c.b16 %v623, %v622
        %v751 = vpack.c.b8 %v750, %v750
        %v752 = vpack.c.b16 %v625, %v624
        %v753 = vpack.c.b8 %v752, %v752
        %v754 = vpack.c.b16 %v627, %v626
        %v755 = vpack.c.b8 %v754, %v754
        %v756 = vpack.c.b16 %v629, %v628
        %v757 = vpack.c.b8 %v756, %v756
        %v758 = vpack.c.b16 %v631, %v630
        %v759 = vpack.c.b8 %v758, %v758
        %v760 = vpack.c.b16 %v633, %v632
        %v761 = vpack.c.b8 %v760, %v760
        %v762 = vpack.c.b16 %v635, %v634
        %v763 = vpack.c.b8 %v762, %v762
        %v764 = vpack.c.b16 %v637, %v636
        %v765 = vpack.c.b8 %v764, %v764
        %vm766 = vnez %v639
        %vm767 = vnez %v641
        %vm768 = vnez %v643
        %vm769 = vnez %v645
        %vm770 = vnez %v647
        %vm771 = vnez %v649
        %vm772 = vnez %v651
        %vm773 = vnez %v653
        %vm774 = vnez %v655
        %vm775 = vnez %v657
        %vm776 = vnez %v659
        %vm777 = vnez %v661
        %vm778 = vnez %v663
        %vm779 = vnez %v665
        %vm780 = vnez %v667
        %vm781 = vnez %v669
        %vm782 = vnez %v671
        %vm783 = vnez %v673
        %vm784 = vnez %v675
        %vm785 = vnez %v677
        %vm786 = vnez %v679
        %vm787 = vnez %v681
        %vm788 = vnez %v683
        %vm789 = vnez %v685
        %vm790 = vnez %v687
        %vm791 = vnez %v689
        %vm792 = vnez %v691
        %vm793 = vnez %v693
        %vm794 = vnez %v695
        %vm795 = vnez %v697
        %vm796 = vnez %v699
        %vm797 = vnez %v701
        %vm798 = vnez %v703
        %vm799 = vnez %v705
        %vm800 = vnez %v707
        %vm801 = vnez %v709
        %vm802 = vnez %v711
        %vm803 = vnez %v713
        %vm804 = vnez %v715
        %vm805 = vnez %v717
        %vm806 = vnez %v719
        %vm807 = vnez %v721
        %vm808 = vnez %v723
        %vm809 = vnez %v725
        %vm810 = vnez %v727
        %vm811 = vnez %v729
        %vm812 = vnez %v731
        %vm813 = vnez %v733
        %vm814 = vnez %v735
        %vm815 = vnez %v737
        %vm816 = vnez %v739
        %vm817 = vnez %v741
        %vm818 = vnez %v743
        %vm819 = vnez %v745
        %vm820 = vnez %v747
        %vm821 = vnez %v749
        %vm822 = vnez %v751
        %vm823 = vnez %v753
        %vm824 = vnez %v755
        %vm825 = vnez %v757
        %vm826 = vnez %v759
        %vm827 = vnez %v761
        %vm828 = vnez %v763
        %vm829 = vnez %v765
        %v830 = vsel %vm766, 16843009, 0
        %v831 = vsel %vm767, 16843009, 0
        %v832 = vsel %vm768, 16843009, 0
        %v833 = vsel %vm769, 16843009, 0
        %v834 = vsel %vm770, 16843009, 0
        %v835 = vsel %vm771, 16843009, 0
        %v836 = vsel %vm772, 16843009, 0
        %v837 = vsel %vm773, 16843009, 0
        %v838 = vsel %vm774, 16843009, 0
        %v839 = vsel %vm775, 16843009, 0
        %v840 = vsel %vm776, 16843009, 0
        %v841 = vsel %vm777, 16843009, 0
        %v842 = vsel %vm778, 16843009, 0
        %v843 = vsel %vm779, 16843009, 0
        %v844 = vsel %vm780, 16843009, 0
        %v845 = vsel %vm781, 16843009, 0
        %v846 = vsel %vm782, 16843009, 0
        %v847 = vsel %vm783, 16843009, 0
        %v848 = vsel %vm784, 16843009, 0
        %v849 = vsel %vm785, 16843009, 0
        %v850 = vsel %vm786, 16843009, 0
        %v851 = vsel %vm787, 16843009, 0
        %v852 = vsel %vm788, 16843009, 0
        %v853 = vsel %vm789, 16843009, 0
        %v854 = vsel %vm790, 16843009, 0
        %v855 = vsel %vm791, 16843009, 0
        %v856 = vsel %vm792, 16843009, 0
        %v857 = vsel %vm793, 16843009, 0
        %v858 = vsel %vm794, 16843009, 0
        %v859 = vsel %vm795, 16843009, 0
        %v860 = vsel %vm796, 16843009, 0
        %v861 = vsel %vm797, 16843009, 0
        %v862 = vsel %vm798, 16843009, 0
        %v863 = vsel %vm799, 16843009, 0
        %v864 = vsel %vm800, 16843009, 0
        %v865 = vsel %vm801, 16843009, 0
        %v866 = vsel %vm802, 16843009, 0
        %v867 = vsel %vm803, 16843009, 0
        %v868 = vsel %vm804, 16843009, 0
        %v869 = vsel %vm805, 16843009, 0
        %v870 = vsel %vm806, 16843009, 0
        %v871 = vsel %vm807, 16843009, 0
        %v872 = vsel %vm808, 16843009, 0
        %v873 = vsel %vm809, 16843009, 0
        %v874 = vsel %vm810, 16843009, 0
        %v875 = vsel %vm811, 16843009, 0
        %v876 = vsel %vm812, 16843009, 0
        %v877 = vsel %vm813, 16843009, 0
        %v878 = vsel %vm814, 16843009, 0
        %v879 = vsel %vm815, 16843009, 0
        %v880 = vsel %vm816, 16843009, 0
        %v881 = vsel %vm817, 16843009, 0
        %v882 = vsel %vm818, 16843009, 0
        %v883 = vsel %vm819, 16843009, 0
        %v884 = vsel %vm820, 16843009, 0
        %v885 = vsel %vm821, 16843009, 0
        %v886 = vsel %vm822, 16843009, 0
        %v887 = vsel %vm823, 16843009, 0
        %v888 = vsel %vm824, 16843009, 0
        %v889 = vsel %vm825, 16843009, 0
        %v890 = vsel %vm826, 16843009, 0
        %v891 = vsel %vm827, 16843009, 0
        %v892 = vsel %vm828, 16843009, 0
        %v893 = vsel %vm829, 16843009, 0
        %v894 = vunpack.c.1.s8 %v830
        %v895 = vunpack.c.0.s8 %v830
        %v896 = vpack.c.b16 %v894, %v895
        %v897 = vunpack.c.1.s8 %v831
        %v898 = vunpack.c.0.s8 %v831
        %v899 = vpack.c.b16 %v897, %v898
        %v900 = vunpack.c.1.s8 %v832
        %v901 = vunpack.c.0.s8 %v832
        %v902 = vpack.c.b16 %v900, %v901
        %v903 = vunpack.c.1.s8 %v833
        %v904 = vunpack.c.0.s8 %v833
        %v905 = vpack.c.b16 %v903, %v904
        %v906 = vunpack.c.1.s8 %v834
        %v907 = vunpack.c.0.s8 %v834
        %v908 = vpack.c.b16 %v906, %v907
        %v909 = vunpack.c.1.s8 %v835
        %v910 = vunpack.c.0.s8 %v835
        %v911 = vpack.c.b16 %v909, %v910
        %v912 = vunpack.c.1.s8 %v836
        %v913 = vunpack.c.0.s8 %v836
        %v914 = vpack.c.b16 %v912, %v913
        %v915 = vunpack.c.1.s8 %v837
        %v916 = vunpack.c.0.s8 %v837
        %v917 = vpack.c.b16 %v915, %v916
        %v918 = vunpack.c.1.s8 %v838
        %v919 = vunpack.c.0.s8 %v838
        %v920 = vpack.c.b16 %v918, %v919
        %v921 = vunpack.c.1.s8 %v839
        %v922 = vunpack.c.0.s8 %v839
        %v923 = vpack.c.b16 %v921, %v922
        %v924 = vunpack.c.1.s8 %v840
        %v925 = vunpack.c.0.s8 %v840
        %v926 = vpack.c.b16 %v924, %v925
        %v927 = vunpack.c.1.s8 %v841
        %v928 = vunpack.c.0.s8 %v841
        %v929 = vpack.c.b16 %v927, %v928
        %v930 = vunpack.c.1.s8 %v842
        %v931 = vunpack.c.0.s8 %v842
        %v932 = vpack.c.b16 %v930, %v931
        %v933 = vunpack.c.1.s8 %v843
        %v934 = vunpack.c.0.s8 %v843
        %v935 = vpack.c.b16 %v933, %v934
        %v936 = vunpack.c.1.s8 %v844
        %v937 = vunpack.c.0.s8 %v844
        %v938 = vpack.c.b16 %v936, %v937
        %v939 = vunpack.c.1.s8 %v845
        %v940 = vunpack.c.0.s8 %v845
        %v941 = vpack.c.b16 %v939, %v940
        %v942 = vunpack.c.1.s8 %v846
        %v943 = vunpack.c.0.s8 %v846
        %v944 = vpack.c.b16 %v942, %v943
        %v945 = vunpack.c.1.s8 %v847
        %v946 = vunpack.c.0.s8 %v847
        %v947 = vpack.c.b16 %v945, %v946
        %v948 = vunpack.c.1.s8 %v848
        %v949 = vunpack.c.0.s8 %v848
        %v950 = vpack.c.b16 %v948, %v949
        %v951 = vunpack.c.1.s8 %v849
        %v952 = vunpack.c.0.s8 %v849
        %v953 = vpack.c.b16 %v951, %v952
        %v954 = vunpack.c.1.s8 %v850
        %v955 = vunpack.c.0.s8 %v850
        %v956 = vpack.c.b16 %v954, %v955
        %v957 = vunpack.c.1.s8 %v851
        %v958 = vunpack.c.0.s8 %v851
        %v959 = vpack.c.b16 %v957, %v958
        %v960 = vunpack.c.1.s8 %v852
        %v961 = vunpack.c.0.s8 %v852
        %v962 = vpack.c.b16 %v960, %v961
        %v963 = vunpack.c.1.s8 %v853
        %v964 = vunpack.c.0.s8 %v853
        %v965 = vpack.c.b16 %v963, %v964
        %v966 = vunpack.c.1.s8 %v854
        %v967 = vunpack.c.0.s8 %v854
        %v968 = vpack.c.b16 %v966, %v967
        %v969 = vunpack.c.1.s8 %v855
        %v970 = vunpack.c.0.s8 %v855
        %v971 = vpack.c.b16 %v969, %v970
        %v972 = vunpack.c.1.s8 %v856
        %v973 = vunpack.c.0.s8 %v856
        %v974 = vpack.c.b16 %v972, %v973
        %v975 = vunpack.c.1.s8 %v857
        %v976 = vunpack.c.0.s8 %v857
        %v977 = vpack.c.b16 %v975, %v976
        %v978 = vunpack.c.1.s8 %v858
        %v979 = vunpack.c.0.s8 %v858
        %v980 = vpack.c.b16 %v978, %v979
        %v981 = vunpack.c.1.s8 %v859
        %v982 = vunpack.c.0.s8 %v859
        %v983 = vpack.c.b16 %v981, %v982
        %v984 = vunpack.c.1.s8 %v860
        %v985 = vunpack.c.0.s8 %v860
        %v986 = vpack.c.b16 %v984, %v985
        %v987 = vunpack.c.1.s8 %v861
        %v988 = vunpack.c.0.s8 %v861
        %v989 = vpack.c.b16 %v987, %v988
        %v990 = vunpack.c.1.s8 %v862
        %v991 = vunpack.c.0.s8 %v862
        %v992 = vpack.c.b16 %v990, %v991
        %v993 = vunpack.c.1.s8 %v863
        %v994 = vunpack.c.0.s8 %v863
        %v995 = vpack.c.b16 %v993, %v994
        %v996 = vunpack.c.1.s8 %v864
        %v997 = vunpack.c.0.s8 %v864
        %v998 = vpack.c.b16 %v996, %v997
        %v999 = vunpack.c.1.s8 %v865
        %v1000 = vunpack.c.0.s8 %v865
        %v1001 = vpack.c.b16 %v999, %v1000
        %v1002 = vunpack.c.1.s8 %v866
        %v1003 = vunpack.c.0.s8 %v866
        %v1004 = vpack.c.b16 %v1002, %v1003
        %v1005 = vunpack.c.1.s8 %v867
        %v1006 = vunpack.c.0.s8 %v867
        %v1007 = vpack.c.b16 %v1005, %v1006
        %v1008 = vunpack.c.1.s8 %v868
        %v1009 = vunpack.c.0.s8 %v868
        %v1010 = vpack.c.b16 %v1008, %v1009
        %v1011 = vunpack.c.1.s8 %v869
        %v1012 = vunpack.c.0.s8 %v869
        %v1013 = vpack.c.b16 %v1011, %v1012
        %v1014 = vunpack.c.1.s8 %v870
        %v1015 = vunpack.c.0.s8 %v870
        %v1016 = vpack.c.b16 %v1014, %v1015
        %v1017 = vunpack.c.1.s8 %v871
        %v1018 = vunpack.c.0.s8 %v871
        %v1019 = vpack.c.b16 %v1017, %v1018
        %v1020 = vunpack.c.1.s8 %v872
        %v1021 = vunpack.c.0.s8 %v872
        %v1022 = vpack.c.b16 %v1020, %v1021
        %v1023 = vunpack.c.1.s8 %v873
        %v1024 = vunpack.c.0.s8 %v873
        %v1025 = vpack.c.b16 %v1023, %v1024
        %v1026 = vunpack.c.1.s8 %v874
        %v1027 = vunpack.c.0.s8 %v874
        %v1028 = vpack.c.b16 %v1026, %v1027
        %v1029 = vunpack.c.1.s8 %v875
        %v1030 = vunpack.c.0.s8 %v875
        %v1031 = vpack.c.b16 %v1029, %v1030
        %v1032 = vunpack.c.1.s8 %v876
        %v1033 = vunpack.c.0.s8 %v876
        %v1034 = vpack.c.b16 %v1032, %v1033
        %v1035 = vunpack.c.1.s8 %v877
        %v1036 = vunpack.c.0.s8 %v877
        %v1037 = vpack.c.b16 %v1035, %v1036
        %v1038 = vunpack.c.1.s8 %v878
        %v1039 = vunpack.c.0.s8 %v878
        %v1040 = vpack.c.b16 %v1038, %v1039
        %v1041 = vunpack.c.1.s8 %v879
        %v1042 = vunpack.c.0.s8 %v879
        %v1043 = vpack.c.b16 %v1041, %v1042
        %v1044 = vunpack.c.1.s8 %v880
        %v1045 = vunpack.c.0.s8 %v880
        %v1046 = vpack.c.b16 %v1044, %v1045
        %v1047 = vunpack.c.1.s8 %v881
        %v1048 = vunpack.c.0.s8 %v881
        %v1049 = vpack.c.b16 %v1047, %v1048
        %v1050 = vunpack.c.1.s8 %v882
        %v1051 = vunpack.c.0.s8 %v882
        %v1052 = vpack.c.b16 %v1050, %v1051
        %v1053 = vunpack.c.1.s8 %v883
        %v1054 = vunpack.c.0.s8 %v883
        %v1055 = vpack.c.b16 %v1053, %v1054
        %v1056 = vunpack.c.1.s8 %v884
        %v1057 = vunpack.c.0.s8 %v884
        %v1058 = vpack.c.b16 %v1056, %v1057
        %v1059 = vunpack.c.1.s8 %v885
        %v1060 = vunpack.c.0.s8 %v885
        %v1061 = vpack.c.b16 %v1059, %v1060
        %v1062 = vunpack.c.1.s8 %v886
        %v1063 = vunpack.c.0.s8 %v886
        %v1064 = vpack.c.b16 %v1062, %v1063
        %v1065 = vunpack.c.1.s8 %v887
        %v1066 = vunpack.c.0.s8 %v887
        %v1067 = vpack.c.b16 %v1065, %v1066
        %v1068 = vunpack.c.1.s8 %v888
        %v1069 = vunpack.c.0.s8 %v888
        %v1070 = vpack.c.b16 %v1068, %v1069
        %v1071 = vunpack.c.1.s8 %v889
        %v1072 = vunpack.c.0.s8 %v889
        %v1073 = vpack.c.b16 %v1071, %v1072
        %v1074 = vunpack.c.1.s8 %v890
        %v1075 = vunpack.c.0.s8 %v890
        %v1076 = vpack.c.b16 %v1074, %v1075
        %v1077 = vunpack.c.1.s8 %v891
        %v1078 = vunpack.c.0.s8 %v891
        %v1079 = vpack.c.b16 %v1077, %v1078
        %v1080 = vunpack.c.1.s8 %v892
        %v1081 = vunpack.c.0.s8 %v892
        %v1082 = vpack.c.b16 %v1080, %v1081
        %v1083 = vunpack.c.1.s8 %v893
        %v1084 = vunpack.c.0.s8 %v893
        %v1085 = vpack.c.b16 %v1083, %v1084
        %vm1086 = vcmp.ne.s16.totalorder %v896, 0
        %vm1087 = vcmp.ne.s16.totalorder %v899, 0
        %vm1088 = vcmp.ne.s16.totalorder %v902, 0
        %vm1089 = vcmp.ne.s16.totalorder %v905, 0
        %vm1090 = vcmp.ne.s16.totalorder %v908, 0
        %vm1091 = vcmp.ne.s16.totalorder %v911, 0
        %vm1092 = vcmp.ne.s16.totalorder %v914, 0
        %vm1093 = vcmp.ne.s16.totalorder %v917, 0
        %vm1094 = vcmp.ne.s16.totalorder %v920, 0
        %vm1095 = vcmp.ne.s16.totalorder %v923, 0
        %vm1096 = vcmp.ne.s16.totalorder %v926, 0
        %vm1097 = vcmp.ne.s16.totalorder %v929, 0
        %vm1098 = vcmp.ne.s16.totalorder %v932, 0
        %vm1099 = vcmp.ne.s16.totalorder %v935, 0
        %vm1100 = vcmp.ne.s16.totalorder %v938, 0
        %vm1101 = vcmp.ne.s16.totalorder %v941, 0
        %vm1102 = vcmp.ne.s16.totalorder %v944, 0
        %vm1103 = vcmp.ne.s16.totalorder %v947, 0
        %vm1104 = vcmp.ne.s16.totalorder %v950, 0
        %vm1105 = vcmp.ne.s16.totalorder %v953, 0
        %vm1106 = vcmp.ne.s16.totalorder %v956, 0
        %vm1107 = vcmp.ne.s16.totalorder %v959, 0
        %vm1108 = vcmp.ne.s16.totalorder %v962, 0
        %vm1109 = vcmp.ne.s16.totalorder %v965, 0
        %vm1110 = vcmp.ne.s16.totalorder %v968, 0
        %vm1111 = vcmp.ne.s16.totalorder %v971, 0
        %vm1112 = vcmp.ne.s16.totalorder %v974, 0
        %vm1113 = vcmp.ne.s16.totalorder %v977, 0
        %vm1114 = vcmp.ne.s16.totalorder %v980, 0
        %vm1115 = vcmp.ne.s16.totalorder %v983, 0
        %vm1116 = vcmp.ne.s16.totalorder %v986, 0
        %vm1117 = vcmp.ne.s16.totalorder %v989, 0
        %vm1118 = vcmp.ne.s16.totalorder %v992, 0
        %vm1119 = vcmp.ne.s16.totalorder %v995, 0
        %vm1120 = vcmp.ne.s16.totalorder %v998, 0
        %vm1121 = vcmp.ne.s16.totalorder %v1001, 0
        %vm1122 = vcmp.ne.s16.totalorder %v1004, 0
        %vm1123 = vcmp.ne.s16.totalorder %v1007, 0
        %vm1124 = vcmp.ne.s16.totalorder %v1010, 0
        %vm1125 = vcmp.ne.s16.totalorder %v1013, 0
        %vm1126 = vcmp.ne.s16.totalorder %v1016, 0
        %vm1127 = vcmp.ne.s16.totalorder %v1019, 0
        %vm1128 = vcmp.ne.s16.totalorder %v1022, 0
        %vm1129 = vcmp.ne.s16.totalorder %v1025, 0
        %vm1130 = vcmp.ne.s16.totalorder %v1028, 0
        %vm1131 = vcmp.ne.s16.totalorder %v1031, 0
        %vm1132 = vcmp.ne.s16.totalorder %v1034, 0
        %vm1133 = vcmp.ne.s16.totalorder %v1037, 0
        %vm1134 = vcmp.ne.s16.totalorder %v1040, 0
        %vm1135 = vcmp.ne.s16.totalorder %v1043, 0
        %vm1136 = vcmp.ne.s16.totalorder %v1046, 0
        %vm1137 = vcmp.ne.s16.totalorder %v1049, 0
        %vm1138 = vcmp.ne.s16.totalorder %v1052, 0
        %vm1139 = vcmp.ne.s16.totalorder %v1055, 0
        %vm1140 = vcmp.ne.s16.totalorder %v1058, 0
        %vm1141 = vcmp.ne.s16.totalorder %v1061, 0
        %vm1142 = vcmp.ne.s16.totalorder %v1064, 0
        %vm1143 = vcmp.ne.s16.totalorder %v1067, 0
        %vm1144 = vcmp.ne.s16.totalorder %v1070, 0
        %vm1145 = vcmp.ne.s16.totalorder %v1073, 0
        %vm1146 = vcmp.ne.s16.totalorder %v1076, 0
        %vm1147 = vcmp.ne.s16.totalorder %v1079, 0
        %vm1148 = vcmp.ne.s16.totalorder %v1082, 0
        %vm1149 = vcmp.ne.s16.totalorder %v1085, 0
        %v1150 = vsel %vm1086, %v350, 0
        %v1151 = vsel %vm1087, %v351, 0
        %v1152 = vsel %vm1088, %v352, 0
        %v1153 = vsel %vm1089, %v353, 0
        %v1154 = vsel %vm1090, %v354, 0
        %v1155 = vsel %vm1091, %v355, 0
        %v1156 = vsel %vm1092, %v356, 0
        %v1157 = vsel %vm1093, %v357, 0
        %v1158 = vsel %vm1094, %v358, 0
        %v1159 = vsel %vm1095, %v359, 0
        %v1160 = vsel %vm1096, %v360, 0
        %v1161 = vsel %vm1097, %v361, 0
        %v1162 = vsel %vm1098, %v362, 0
        %v1163 = vsel %vm1099, %v363, 0
        %v1164 = vsel %vm1100, %v364, 0
        %v1165 = vsel %vm1101, %v365, 0
        %v1166 = vsel %vm1102, %v366, 0
        %v1167 = vsel %vm1103, %v367, 0
        %v1168 = vsel %vm1104, %v368, 0
        %v1169 = vsel %vm1105, %v369, 0
        %v1170 = vsel %vm1106, %v370, 0
        %v1171 = vsel %vm1107, %v371, 0
        %v1172 = vsel %vm1108, %v372, 0
        %v1173 = vsel %vm1109, %v373, 0
        %v1174 = vsel %vm1110, %v374, 0
        %v1175 = vsel %vm1111, %v375, 0
        %v1176 = vsel %vm1112, %v376, 0
        %v1177 = vsel %vm1113, %v377, 0
        %v1178 = vsel %vm1114, %v378, 0
        %v1179 = vsel %vm1115, %v379, 0
        %v1180 = vsel %vm1116, %v380, 0
        %v1181 = vsel %vm1117, %v381, 0
        %v1182 = vsel %vm1118, %v382, 0
        %v1183 = vsel %vm1119, %v383, 0
        %v1184 = vsel %vm1120, %v384, 0
        %v1185 = vsel %vm1121, %v385, 0
        %v1186 = vsel %vm1122, %v386, 0
        %v1187 = vsel %vm1123, %v387, 0
        %v1188 = vsel %vm1124, %v388, 0
        %v1189 = vsel %vm1125, %v389, 0
        %v1190 = vsel %vm1126, %v390, 0
        %v1191 = vsel %vm1127, %v391, 0
        %v1192 = vsel %vm1128, %v392, 0
        %v1193 = vsel %vm1129, %v393, 0
        %v1194 = vsel %vm1130, %v394, 0
        %v1195 = vsel %vm1131, %v395, 0
        %v1196 = vsel %vm1132, %v396, 0
        %v1197 = vsel %vm1133, %v397, 0
        %v1198 = vsel %vm1134, %v398, 0
        %v1199 = vsel %vm1135, %v399, 0
        %v1200 = vsel %vm1136, %v400, 0
        %v1201 = vsel %vm1137, %v401, 0
        %v1202 = vsel %vm1138, %v402, 0
        %v1203 = vsel %vm1139, %v403, 0
        %v1204 = vsel %vm1140, %v404, 0
        %v1205 = vsel %vm1141, %v405, 0
        %v1206 = vsel %vm1142, %v406, 0
        %v1207 = vsel %vm1143, %v407, 0
        %v1208 = vsel %vm1144, %v408, 0
        %v1209 = vsel %vm1145, %v409, 0
        %v1210 = vsel %vm1146, %v410, 0
        %v1211 = vsel %vm1147, %v411, 0
        %v1212 = vsel %vm1148, %v412, 0
        %v1213 = vsel %vm1149, %v413, 0
        %v1214 = vld [vmem:[#allocation2] sm:$0xff]
        %v1215 = vld [vmem:[#allocation2 + $0x8] sm:$0xff]
        %v1216 = vld [vmem:[#allocation2 + $0x10] sm:$0xff]
        %v1217 = vld [vmem:[#allocation2 + $0x18] sm:$0xff]
        %v1218 = vld [vmem:[#allocation2 + $0x20] sm:$0xff]
        %v1219 = vld [vmem:[#allocation2 + $0x28] sm:$0xff]
        %v1220 = vld [vmem:[#allocation2 + $0x30] sm:$0xff]
        %v1221 = vld [vmem:[#allocation2 + $0x38] sm:$0xff]
        %v1222 = vld [vmem:[#allocation2 + $0x40] sm:$0xff]
        %v1223 = vld [vmem:[#allocation2 + $0x48] sm:$0xff]
        %v1224 = vld [vmem:[#allocation2 + $0x50] sm:$0xff]
        %v1225 = vld [vmem:[#allocation2 + $0x58] sm:$0xff]
        %v1226 = vld [vmem:[#allocation2 + $0x60] sm:$0xff]
        %v1227 = vld [vmem:[#allocation2 + $0x68] sm:$0xff]
        %v1228 = vld [vmem:[#allocation2 + $0x70] sm:$0xff]
        %v1229 = vld [vmem:[#allocation2 + $0x78] sm:$0xff]
        %v1230 = vld [vmem:[#allocation2 + $0x80] sm:$0xff]
        %v1231 = vld [vmem:[#allocation2 + $0x88] sm:$0xff]
        %v1232 = vld [vmem:[#allocation2 + $0x90] sm:$0xff]
        %v1233 = vld [vmem:[#allocation2 + $0x98] sm:$0xff]
        %v1234 = vld [vmem:[#allocation2 + $0xa0] sm:$0xff]
        %v1235 = vld [vmem:[#allocation2 + $0xa8] sm:$0xff]
        %v1236 = vld [vmem:[#allocation2 + $0xb0] sm:$0xff]
        %v1237 = vld [vmem:[#allocation2 + $0xb8] sm:$0xff]
        %v1238 = vld [vmem:[#allocation2 + $0xc0] sm:$0xff]
        %v1239 = vld [vmem:[#allocation2 + $0xc8] sm:$0xff]
        %v1240 = vld [vmem:[#allocation2 + $0xd0] sm:$0xff]
        %v1241 = vld [vmem:[#allocation2 + $0xd8] sm:$0xff]
        %v1242 = vld [vmem:[#allocation2 + $0xe0] sm:$0xff]
        %v1243 = vld [vmem:[#allocation2 + $0xe8] sm:$0xff]
        %v1244 = vld [vmem:[#allocation2 + $0xf0] sm:$0xff]
        %v1245 = vld [vmem:[#allocation2 + $0xf8] sm:$0xff]
        %v1246 = vld [vmem:[%s251] sm:$0xff]
        %v1247 = vld [vmem:[%s251 + $0x8] sm:$0xff]
        %v1248 = vld [vmem:[%s251 + $0x10] sm:$0xff]
        %v1249 = vld [vmem:[%s251 + $0x18] sm:$0xff]
        %v1250 = vld [vmem:[%s251 + $0x20] sm:$0xff]
        %v1251 = vld [vmem:[%s251 + $0x28] sm:$0xff]
        %v1252 = vld [vmem:[%s251 + $0x30] sm:$0xff]
        %v1253 = vld [vmem:[%s251 + $0x38] sm:$0xff]
        %v1254 = vld [vmem:[%s251 + $0x40] sm:$0xff]
        %v1255 = vld [vmem:[%s251 + $0x48] sm:$0xff]
        %v1256 = vld [vmem:[%s251 + $0x50] sm:$0xff]
        %v1257 = vld [vmem:[%s251 + $0x58] sm:$0xff]
        %v1258 = vld [vmem:[%s251 + $0x60] sm:$0xff]
        %v1259 = vld [vmem:[%s251 + $0x68] sm:$0xff]
        %v1260 = vld [vmem:[%s251 + $0x70] sm:$0xff]
        %v1261 = vld [vmem:[%s251 + $0x78] sm:$0xff]
        %v1262 = vld [vmem:[%s251 + $0x80] sm:$0xff]
        %v1263 = vld [vmem:[%s251 + $0x88] sm:$0xff]
        %v1264 = vld [vmem:[%s251 + $0x90] sm:$0xff]
        %v1265 = vld [vmem:[%s251 + $0x98] sm:$0xff]
        %v1266 = vld [vmem:[%s251 + $0xa0] sm:$0xff]
        %v1267 = vld [vmem:[%s251 + $0xa8] sm:$0xff]
        %v1268 = vld [vmem:[%s251 + $0xb0] sm:$0xff]
        %v1269 = vld [vmem:[%s251 + $0xb8] sm:$0xff]
        %v1270 = vld [vmem:[%s251 + $0xc0] sm:$0xff]
        %v1271 = vld [vmem:[%s251 + $0xc8] sm:$0xff]
        %v1272 = vld [vmem:[%s251 + $0xd0] sm:$0xff]
        %v1273 = vld [vmem:[%s251 + $0xd8] sm:$0xff]
        %v1274 = vld [vmem:[%s251 + $0xe0] sm:$0xff]
        %v1275 = vld [vmem:[%s251 + $0xe8] sm:$0xff]
        %v1276 = vld [vmem:[%s251 + $0xf0] sm:$0xff]
        %v1277 = vld [vmem:[%s251 + $0xf8] sm:$0xff]
        %v1310 = vunpack.c.l.b16 %v1246
        %v1311 = vunpack.c.h.b16 %v1246
        %v1312 = vunpack.c.l.b16 %v1247
        %v1313 = vunpack.c.h.b16 %v1247
        %v1314 = vunpack.c.l.b16 %v1248
        %v1315 = vunpack.c.h.b16 %v1248
        %v1316 = vunpack.c.l.b16 %v1249
        %v1317 = vunpack.c.h.b16 %v1249
        %v1318 = vunpack.c.l.b16 %v1250
        %v1319 = vunpack.c.h.b16 %v1250
        %v1320 = vunpack.c.l.b16 %v1251
        %v1321 = vunpack.c.h.b16 %v1251
        %v1322 = vunpack.c.l.b16 %v1252
        %v1323 = vunpack.c.h.b16 %v1252
        %v1324 = vunpack.c.l.b16 %v1253
        %v1325 = vunpack.c.h.b16 %v1253
        %v1326 = vunpack.c.l.b16 %v1254
        %v1327 = vunpack.c.h.b16 %v1254
        %v1328 = vunpack.c.l.b16 %v1255
        %v1329 = vunpack.c.h.b16 %v1255
        %v1330 = vunpack.c.l.b16 %v1256
        %v1331 = vunpack.c.h.b16 %v1256
        %v1332 = vunpack.c.l.b16 %v1257
        %v1333 = vunpack.c.h.b16 %v1257
        %v1334 = vunpack.c.l.b16 %v1258
        %v1335 = vunpack.c.h.b16 %v1258
        %v1336 = vunpack.c.l.b16 %v1259
        %v1337 = vunpack.c.h.b16 %v1259
        %v1338 = vunpack.c.l.b16 %v1260
        %v1339 = vunpack.c.h.b16 %v1260
        %v1340 = vunpack.c.l.b16 %v1261
        %v1341 = vunpack.c.h.b16 %v1261
        %v1342 = vunpack.c.l.b16 %v1262
        %v1343 = vunpack.c.h.b16 %v1262
        %v1344 = vunpack.c.l.b16 %v1263
        %v1345 = vunpack.c.h.b16 %v1263
        %v1346 = vunpack.c.l.b16 %v1264
        %v1347 = vunpack.c.h.b16 %v1264
        %v1348 = vunpack.c.l.b16 %v1265
        %v1349 = vunpack.c.h.b16 %v1265
        %v1350 = vunpack.c.l.b16 %v1266
        %v1351 = vunpack.c.h.b16 %v1266
        %v1352 = vunpack.c.l.b16 %v1267
        %v1353 = vunpack.c.h.b16 %v1267
        %v1354 = vunpack.c.l.b16 %v1268
        %v1355 = vunpack.c.h.b16 %v1268
        %v1356 = vunpack.c.l.b16 %v1269
        %v1357 = vunpack.c.h.b16 %v1269
        %v1358 = vunpack.c.l.b16 %v1270
        %v1359 = vunpack.c.h.b16 %v1270
        %v1360 = vunpack.c.l.b16 %v1271
        %v1361 = vunpack.c.h.b16 %v1271
        %v1362 = vunpack.c.l.b16 %v1272
        %v1363 = vunpack.c.h.b16 %v1272
        %v1364 = vunpack.c.l.b16 %v1273
        %v1365 = vunpack.c.h.b16 %v1273
        %v1366 = vunpack.c.l.b16 %v1274
        %v1367 = vunpack.c.h.b16 %v1274
        %v1368 = vunpack.c.l.b16 %v1275
        %v1369 = vunpack.c.h.b16 %v1275
        %v1370 = vunpack.c.l.b16 %v1276
        %v1371 = vunpack.c.h.b16 %v1276
        %v1372 = vunpack.c.l.b16 %v1277
        %v1373 = vunpack.c.h.b16 %v1277
        %v1374 = vpack.c.b16 %v1314, %v1310
        %v1375 = vpack.c.b16 %v1315, %v1311
        %v1376 = vpack.c.b16 %v1316, %v1312
        %v1377 = vpack.c.b16 %v1317, %v1313
        %v1378 = vpack.c.b16 %v1322, %v1318
        %v1379 = vpack.c.b16 %v1323, %v1319
        %v1380 = vpack.c.b16 %v1324, %v1320
        %v1381 = vpack.c.b16 %v1325, %v1321
        %v1382 = vpack.c.b16 %v1330, %v1326
        %v1383 = vpack.c.b16 %v1331, %v1327
        %v1384 = vpack.c.b16 %v1332, %v1328
        %v1385 = vpack.c.b16 %v1333, %v1329
        %v1386 = vpack.c.b16 %v1338, %v1334
        %v1387 = vpack.c.b16 %v1339, %v1335
        %v1388 = vpack.c.b16 %v1340, %v1336
        %v1389 = vpack.c.b16 %v1341, %v1337
        %v1390 = vpack.c.b16 %v1346, %v1342
        %v1391 = vpack.c.b16 %v1347, %v1343
        %v1392 = vpack.c.b16 %v1348, %v1344
        %v1393 = vpack.c.b16 %v1349, %v1345
        %v1394 = vpack.c.b16 %v1354, %v1350
        %v1395 = vpack.c.b16 %v1355, %v1351
        %v1396 = vpack.c.b16 %v1356, %v1352
        %v1397 = vpack.c.b16 %v1357, %v1353
        %v1398 = vpack.c.b16 %v1362, %v1358
        %v1399 = vpack.c.b16 %v1363, %v1359
        %v1400 = vpack.c.b16 %v1364, %v1360
        %v1401 = vpack.c.b16 %v1365, %v1361
        %v1402 = vpack.c.b16 %v1370, %v1366
        %v1403 = vpack.c.b16 %v1371, %v1367
        %v1404 = vpack.c.b16 %v1372, %v1368
        %v1405 = vpack.c.b16 %v1373, %v1369
        %v1502 = vunpack.c.l.b16 %v1150
        %v1503 = vunpack.c.h.b16 %v1150
        %v1504 = vunpack.c.l.b16 %v1151
        %v1505 = vunpack.c.h.b16 %v1151
        %v1506 = vunpack.c.l.b16 %v1152
        %v1507 = vunpack.c.h.b16 %v1152
        %v1508 = vunpack.c.l.b16 %v1153
        %v1509 = vunpack.c.h.b16 %v1153
        %v1510 = vunpack.c.l.b16 %v1154
        %v1511 = vunpack.c.h.b16 %v1154
        %v1512 = vunpack.c.l.b16 %v1155
        %v1513 = vunpack.c.h.b16 %v1155
        %v1514 = vunpack.c.l.b16 %v1156
        %v1515 = vunpack.c.h.b16 %v1156
        %v1516 = vunpack.c.l.b16 %v1157
        %v1517 = vunpack.c.h.b16 %v1157
        %v1518 = vunpack.c.l.b16 %v1158
        %v1519 = vunpack.c.h.b16 %v1158
        %v1520 = vunpack.c.l.b16 %v1159
        %v1521 = vunpack.c.h.b16 %v1159
        %v1522 = vunpack.c.l.b16 %v1160
        %v1523 = vunpack.c.h.b16 %v1160
        %v1524 = vunpack.c.l.b16 %v1161
        %v1525 = vunpack.c.h.b16 %v1161
        %v1526 = vunpack.c.l.b16 %v1162
        %v1527 = vunpack.c.h.b16 %v1162
        %v1528 = vunpack.c.l.b16 %v1163
        %v1529 = vunpack.c.h.b16 %v1163
        %v1530 = vunpack.c.l.b16 %v1164
        %v1531 = vunpack.c.h.b16 %v1164
        %v1532 = vunpack.c.l.b16 %v1165
        %v1533 = vunpack.c.h.b16 %v1165
        %v1534 = vunpack.c.l.b16 %v1166
        %v1535 = vunpack.c.h.b16 %v1166
        %v1536 = vunpack.c.l.b16 %v1167
        %v1537 = vunpack.c.h.b16 %v1167
        %v1538 = vunpack.c.l.b16 %v1168
        %v1539 = vunpack.c.h.b16 %v1168
        %v1540 = vunpack.c.l.b16 %v1169
        %v1541 = vunpack.c.h.b16 %v1169
        %v1542 = vunpack.c.l.b16 %v1170
        %v1543 = vunpack.c.h.b16 %v1170
        %v1544 = vunpack.c.l.b16 %v1171
        %v1545 = vunpack.c.h.b16 %v1171
        %v1546 = vunpack.c.l.b16 %v1172
        %v1547 = vunpack.c.h.b16 %v1172
        %v1548 = vunpack.c.l.b16 %v1173
        %v1549 = vunpack.c.h.b16 %v1173
        %v1550 = vunpack.c.l.b16 %v1174
        %v1551 = vunpack.c.h.b16 %v1174
        %v1552 = vunpack.c.l.b16 %v1175
        %v1553 = vunpack.c.h.b16 %v1175
        %v1554 = vunpack.c.l.b16 %v1176
        %v1555 = vunpack.c.h.b16 %v1176
        %v1556 = vunpack.c.l.b16 %v1177
        %v1557 = vunpack.c.h.b16 %v1177
        %v1558 = vunpack.c.l.b16 %v1178
        %v1559 = vunpack.c.h.b16 %v1178
        %v1560 = vunpack.c.l.b16 %v1179
        %v1561 = vunpack.c.h.b16 %v1179
        %v1562 = vunpack.c.l.b16 %v1180
        %v1563 = vunpack.c.h.b16 %v1180
        %v1564 = vunpack.c.l.b16 %v1181
        %v1565 = vunpack.c.h.b16 %v1181
        %v1566 = vunpack.c.l.b16 %v1182
        %v1567 = vunpack.c.h.b16 %v1182
        %v1568 = vunpack.c.l.b16 %v1183
        %v1569 = vunpack.c.h.b16 %v1183
        %v1570 = vunpack.c.l.b16 %v1184
        %v1571 = vunpack.c.h.b16 %v1184
        %v1572 = vunpack.c.l.b16 %v1185
        %v1573 = vunpack.c.h.b16 %v1185
        %v1574 = vunpack.c.l.b16 %v1186
        %v1575 = vunpack.c.h.b16 %v1186
        %v1576 = vunpack.c.l.b16 %v1187
        %v1577 = vunpack.c.h.b16 %v1187
        %v1578 = vunpack.c.l.b16 %v1188
        %v1579 = vunpack.c.h.b16 %v1188
        %v1580 = vunpack.c.l.b16 %v1189
        %v1581 = vunpack.c.h.b16 %v1189
        %v1582 = vunpack.c.l.b16 %v1190
        %v1583 = vunpack.c.h.b16 %v1190
        %v1584 = vunpack.c.l.b16 %v1191
        %v1585 = vunpack.c.h.b16 %v1191
        %v1586 = vunpack.c.l.b16 %v1192
        %v1587 = vunpack.c.h.b16 %v1192
        %v1588 = vunpack.c.l.b16 %v1193
        %v1589 = vunpack.c.h.b16 %v1193
        %v1590 = vunpack.c.l.b16 %v1194
        %v1591 = vunpack.c.h.b16 %v1194
        %v1592 = vunpack.c.l.b16 %v1195
        %v1593 = vunpack.c.h.b16 %v1195
        %v1594 = vunpack.c.l.b16 %v1196
        %v1595 = vunpack.c.h.b16 %v1196
        %v1596 = vunpack.c.l.b16 %v1197
        %v1597 = vunpack.c.h.b16 %v1197
        %v1598 = vunpack.c.l.b16 %v1198
        %v1599 = vunpack.c.h.b16 %v1198
        %v1600 = vunpack.c.l.b16 %v1199
        %v1601 = vunpack.c.h.b16 %v1199
        %v1602 = vunpack.c.l.b16 %v1200
        %v1603 = vunpack.c.h.b16 %v1200
        %v1604 = vunpack.c.l.b16 %v1201
        %v1605 = vunpack.c.h.b16 %v1201
        %v1606 = vunpack.c.l.b16 %v1202
        %v1607 = vunpack.c.h.b16 %v1202
        %v1608 = vunpack.c.l.b16 %v1203
        %v1609 = vunpack.c.h.b16 %v1203
        %v1610 = vunpack.c.l.b16 %v1204
        %v1611 = vunpack.c.h.b16 %v1204
        %v1612 = vunpack.c.l.b16 %v1205
        %v1613 = vunpack.c.h.b16 %v1205
        %v1614 = vunpack.c.l.b16 %v1206
        %v1615 = vunpack.c.h.b16 %v1206
        %v1616 = vunpack.c.l.b16 %v1207
        %v1617 = vunpack.c.h.b16 %v1207
        %v1618 = vunpack.c.l.b16 %v1208
        %v1619 = vunpack.c.h.b16 %v1208
        %v1620 = vunpack.c.l.b16 %v1209
        %v1621 = vunpack.c.h.b16 %v1209
        %v1622 = vunpack.c.l.b16 %v1210
        %v1623 = vunpack.c.h.b16 %v1210
        %v1624 = vunpack.c.l.b16 %v1211
        %v1625 = vunpack.c.h.b16 %v1211
        %v1626 = vunpack.c.l.b16 %v1212
        %v1627 = vunpack.c.h.b16 %v1212
        %v1628 = vunpack.c.l.b16 %v1213
        %v1629 = vunpack.c.h.b16 %v1213
        %v1630 = vpack.c.b16 %v1504, %v1502
        %v1631 = vpack.c.b16 %v1505, %v1503
        %v1632 = vpack.c.b16 %v1508, %v1506
        %v1633 = vpack.c.b16 %v1509, %v1507
        %v1634 = vpack.c.b16 %v1512, %v1510
        %v1635 = vpack.c.b16 %v1513, %v1511
        %v1636 = vpack.c.b16 %v1516, %v1514
        %v1637 = vpack.c.b16 %v1517, %v1515
        %v1638 = vpack.c.b16 %v1520, %v1518
        %v1639 = vpack.c.b16 %v1521, %v1519
        %v1640 = vpack.c.b16 %v1524, %v1522
        %v1641 = vpack.c.b16 %v1525, %v1523
        %v1642 = vpack.c.b16 %v1528, %v1526
        %v1643 = vpack.c.b16 %v1529, %v1527
        %v1644 = vpack.c.b16 %v1532, %v1530
        %v1645 = vpack.c.b16 %v1533, %v1531
        %v1646 = vpack.c.b16 %v1536, %v1534
        %v1647 = vpack.c.b16 %v1537, %v1535
        %v1648 = vpack.c.b16 %v1540, %v1538
        %v1649 = vpack.c.b16 %v1541, %v1539
        %v1650 = vpack.c.b16 %v1544, %v1542
        %v1651 = vpack.c.b16 %v1545, %v1543
        %v1652 = vpack.c.b16 %v1548, %v1546
        %v1653 = vpack.c.b16 %v1549, %v1547
        %v1654 = vpack.c.b16 %v1552, %v1550
        %v1655 = vpack.c.b16 %v1553, %v1551
        %v1656 = vpack.c.b16 %v1556, %v1554
        %v1657 = vpack.c.b16 %v1557, %v1555
        %v1658 = vpack.c.b16 %v1560, %v1558
        %v1659 = vpack.c.b16 %v1561, %v1559
        %v1660 = vpack.c.b16 %v1564, %v1562
        %v1661 = vpack.c.b16 %v1565, %v1563
        %v1662 = vpack.c.b16 %v1568, %v1566
        %v1663 = vpack.c.b16 %v1569, %v1567
        %v1664 = vpack.c.b16 %v1572, %v1570
        %v1665 = vpack.c.b16 %v1573, %v1571
        %v1666 = vpack.c.b16 %v1576, %v1574
        %v1667 = vpack.c.b16 %v1577, %v1575
        %v1668 = vpack.c.b16 %v1580, %v1578
        %v1669 = vpack.c.b16 %v1581, %v1579
        %v1670 = vpack.c.b16 %v1584, %v1582
        %v1671 = vpack.c.b16 %v1585, %v1583
        %v1672 = vpack.c.b16 %v1588, %v1586
        %v1673 = vpack.c.b16 %v1589, %v1587
        %v1674 = vpack.c.b16 %v1592, %v1590
        %v1675 = vpack.c.b16 %v1593, %v1591
        %v1676 = vpack.c.b16 %v1596, %v1594
        %v1677 = vpack.c.b16 %v1597, %v1595
        %v1678 = vpack.c.b16 %v1600, %v1598
        %v1679 = vpack.c.b16 %v1601, %v1599
        %v1680 = vpack.c.b16 %v1604, %v1602
        %v1681 = vpack.c.b16 %v1605, %v1603
        %v1682 = vpack.c.b16 %v1608, %v1606
        %v1683 = vpack.c.b16 %v1609, %v1607
        %v1684 = vpack.c.b16 %v1612, %v1610
        %v1685 = vpack.c.b16 %v1613, %v1611
        %v1686 = vpack.c.b16 %v1616, %v1614
        %v1687 = vpack.c.b16 %v1617, %v1615
        %v1688 = vpack.c.b16 %v1620, %v1618
        %v1689 = vpack.c.b16 %v1621, %v1619
        %v1690 = vpack.c.b16 %v1624, %v1622
        %v1691 = vpack.c.b16 %v1625, %v1623
        %v1692 = vpack.c.b16 %v1628, %v1626
        %v1693 = vpack.c.b16 %v1629, %v1627
        %1758 = vmatprep.subr.bf16.mxu0 %v1645
        %1759 = vmatpush1.bf16.msra.mxu0 %v1644
        %1760 = vmatprep.subr.bf16.mxu0 %v1643
        %1761 = vmatpush1.bf16.msra.mxu0 %v1642
        %1762 = vmatprep.subr.bf16.mxu0 %v1641
        %1763 = vmatpush1.bf16.msra.mxu0 %v1640
        %1764 = vmatprep.subr.bf16.mxu0 %v1639
        %1765 = vmatpush1.bf16.msra.mxu0 %v1638
        %1766 = vmatprep.subr.bf16.mxu0 %v1637
        %1767 = vmatpush1.bf16.msra.mxu0 %v1636
        %1768 = vmatprep.subr.bf16.mxu0 %v1635
        %1769 = vmatpush1.bf16.msra.mxu0 %v1634
        %1770 = vmatprep.subr.bf16.mxu0 %v1633
        %1771 = vmatpush1.bf16.msra.mxu0 %v1632
        %1772 = vmatprep.subr.bf16.mxu0 %v1631
        %1773 = vmatpush1.bf16.msra.mxu0 %v1630
        %1774 = vmatprep.subr.bf16.mxu0 %v1661
        %1775 = vmatpush2.bf16.msra.mxu0 %v1660
        %1776 = vmatprep.subr.bf16.mxu0 %v1659
        %1777 = vmatpush2.bf16.msra.mxu0 %v1658
        %1778 = vmatprep.subr.bf16.mxu0 %v1657
        %1779 = vmatpush2.bf16.msra.mxu0 %v1656
        %1780 = vmatprep.subr.bf16.mxu0 %v1655
        %1781 = vmatpush2.bf16.msra.mxu0 %v1654
        %1782 = vmatprep.subr.bf16.mxu0 %v1653
        %1783 = vmatpush2.bf16.msra.mxu0 %v1652
        %1784 = vmatprep.subr.bf16.mxu0 %v1651
        %1785 = vmatpush2.bf16.msra.mxu0 %v1650
        %1786 = vmatprep.subr.bf16.mxu0 %v1649
        %1787 = vmatpush2.bf16.msra.mxu0 %v1648
        %1788 = vmatprep.subr.bf16.mxu0 %v1647
        %1789 = vmatpush2.bf16.msra.mxu0 %v1646
        %1790 = vmatprep.mubr.bf16.mxu0 %v1375
        %1791 = vmatmul.mubr.bf16.gmra.mxu0 %v1374
        %v1792 = vpop.f32.mrf.mxu0
        %v1793 = vadd.f32 0.0, %v1792
        %v1794 = vpop.f32.mrf.mxu0
        %v1795 = vadd.f32 0.0, %v1794
        %v1796 = vpop.f32.mrf.mxu0
        %v1797 = vadd.f32 0.0, %v1796
        %v1798 = vpop.f32.mrf.mxu0
        %v1799 = vadd.f32 0.0, %v1798
        %1800 = vmatprep.mubr.bf16.mxu0 %v1379
        %1801 = vmatmul.mubr.bf16.gmra.mxu0 %v1378
        %v1802 = vpop.f32.mrf.mxu0
        %v1803 = vadd.f32 0.0, %v1802
        %v1804 = vpop.f32.mrf.mxu0
        %v1805 = vadd.f32 0.0, %v1804
        %v1806 = vpop.f32.mrf.mxu0
        %v1807 = vadd.f32 0.0, %v1806
        %v1808 = vpop.f32.mrf.mxu0
        %v1809 = vadd.f32 0.0, %v1808
        %1810 = vmatprep.mubr.bf16.mxu0 %v1383
        %1811 = vmatmul.mubr.bf16.gmra.mxu0 %v1382
        %v1812 = vpop.f32.mrf.mxu0
        %v1813 = vadd.f32 0.0, %v1812
        %v1814 = vpop.f32.mrf.mxu0
        %v1815 = vadd.f32 0.0, %v1814
        %v1816 = vpop.f32.mrf.mxu0
        %v1817 = vadd.f32 0.0, %v1816
        %v1818 = vpop.f32.mrf.mxu0
        %v1819 = vadd.f32 0.0, %v1818
        %1820 = vmatprep.mubr.bf16.mxu0 %v1387
        %1821 = vmatmul.mubr.bf16.gmra.mxu0 %v1386
        %v1822 = vpop.f32.mrf.mxu0
        %v1823 = vadd.f32 0.0, %v1822
        %v1824 = vpop.f32.mrf.mxu0
        %v1825 = vadd.f32 0.0, %v1824
        %v1826 = vpop.f32.mrf.mxu0
        %v1827 = vadd.f32 0.0, %v1826
        %v1828 = vpop.f32.mrf.mxu0
        %v1829 = vadd.f32 0.0, %v1828
        %1830 = vmatprep.mubr.bf16.mxu0 %v1391
        %1831 = vmatmul.mubr.bf16.gmra.mxu0 %v1390
        %v1832 = vpop.f32.mrf.mxu0
        %v1833 = vadd.f32 0.0, %v1832
        %v1834 = vpop.f32.mrf.mxu0
        %v1835 = vadd.f32 0.0, %v1834
        %v1836 = vpop.f32.mrf.mxu0
        %v1837 = vadd.f32 0.0, %v1836
        %v1838 = vpop.f32.mrf.mxu0
        %v1839 = vadd.f32 0.0, %v1838
        %1840 = vmatprep.mubr.bf16.mxu0 %v1395
        %1841 = vmatmul.mubr.bf16.gmra.mxu0 %v1394
        %v1842 = vpop.f32.mrf.mxu0
        %v1843 = vadd.f32 0.0, %v1842
        %v1844 = vpop.f32.mrf.mxu0
        %v1845 = vadd.f32 0.0, %v1844
        %v1846 = vpop.f32.mrf.mxu0
        %v1847 = vadd.f32 0.0, %v1846
        %v1848 = vpop.f32.mrf.mxu0
        %v1849 = vadd.f32 0.0, %v1848
        %1850 = vmatprep.mubr.bf16.mxu0 %v1399
        %1851 = vmatmul.mubr.bf16.gmra.mxu0 %v1398
        %v1852 = vpop.f32.mrf.mxu0
        %v1853 = vadd.f32 0.0, %v1852
        %v1854 = vpop.f32.mrf.mxu0
        %v1855 = vadd.f32 0.0, %v1854
        %v1856 = vpop.f32.mrf.mxu0
        %v1857 = vadd.f32 0.0, %v1856
        %v1858 = vpop.f32.mrf.mxu0
        %v1859 = vadd.f32 0.0, %v1858
        %1860 = vmatprep.mubr.bf16.mxu0 %v1403
        %1861 = vmatmul.mubr.bf16.gmra.mxu0 %v1402
        %v1862 = vpop.f32.mrf.mxu0
        %v1863 = vadd.f32 0.0, %v1862
        %v1864 = vpop.f32.mrf.mxu0
        %v1865 = vadd.f32 0.0, %v1864
        %v1866 = vpop.f32.mrf.mxu0
        %v1867 = vadd.f32 0.0, %v1866
        %v1868 = vpop.f32.mrf.mxu0
        %v1869 = vadd.f32 0.0, %v1868
        %1870 = vdwg.mxu0
        %1871 = vmatprep.subr.bf16.mxu0 %v1677
        %1872 = vmatpush1.bf16.msra.mxu0 %v1676
        %1873 = vmatprep.subr.bf16.mxu0 %v1675
        %1874 = vmatpush1.bf16.msra.mxu0 %v1674
        %1875 = vmatprep.subr.bf16.mxu0 %v1673
        %1876 = vmatpush1.bf16.msra.mxu0 %v1672
        %1877 = vmatprep.subr.bf16.mxu0 %v1671
        %1878 = vmatpush1.bf16.msra.mxu0 %v1670
        %1879 = vmatprep.subr.bf16.mxu0 %v1669
        %1880 = vmatpush1.bf16.msra.mxu0 %v1668
        %1881 = vmatprep.subr.bf16.mxu0 %v1667
        %1882 = vmatpush1.bf16.msra.mxu0 %v1666
        %1883 = vmatprep.subr.bf16.mxu0 %v1665
        %1884 = vmatpush1.bf16.msra.mxu0 %v1664
        %1885 = vmatprep.subr.bf16.mxu0 %v1663
        %1886 = vmatpush1.bf16.msra.mxu0 %v1662
        %1887 = vmatprep.subr.bf16.mxu0 %v1693
        %1888 = vmatpush2.bf16.msra.mxu0 %v1692
        %1889 = vmatprep.subr.bf16.mxu0 %v1691
        %1890 = vmatpush2.bf16.msra.mxu0 %v1690
        %1891 = vmatprep.subr.bf16.mxu0 %v1689
        %1892 = vmatpush2.bf16.msra.mxu0 %v1688
        %1893 = vmatprep.subr.bf16.mxu0 %v1687
        %1894 = vmatpush2.bf16.msra.mxu0 %v1686
        %1895 = vmatprep.subr.bf16.mxu0 %v1685
        %1896 = vmatpush2.bf16.msra.mxu0 %v1684
        %1897 = vmatprep.subr.bf16.mxu0 %v1683
        %1898 = vmatpush2.bf16.msra.mxu0 %v1682
        %1899 = vmatprep.subr.bf16.mxu0 %v1681
        %1900 = vmatpush2.bf16.msra.mxu0 %v1680
        %1901 = vmatprep.subr.bf16.mxu0 %v1679
        %1902 = vmatpush2.bf16.msra.mxu0 %v1678
        %1903 = vmatprep.mubr.bf16.mxu0 %v1377
        %1904 = vmatmul.mubr.bf16.gmra.mxu0 %v1376
        %v1905 = vpop.f32.mrf.mxu0
        %v1906 = vadd.f32 %v1793, %v1905
        %v1907 = vpop.f32.mrf.mxu0
        %v1908 = vadd.f32 %v1795, %v1907
        %v1909 = vpop.f32.mrf.mxu0
        %v1910 = vadd.f32 %v1797, %v1909
        %v1911 = vpop.f32.mrf.mxu0
        %v1912 = vadd.f32 %v1799, %v1911
        %1913 = vmatprep.mubr.bf16.mxu0 %v1381
        %1914 = vmatmul.mubr.bf16.gmra.mxu0 %v1380
        %v1915 = vpop.f32.mrf.mxu0
        %v1916 = vadd.f32 %v1803, %v1915
        %v1917 = vpop.f32.mrf.mxu0
        %v1918 = vadd.f32 %v1805, %v1917
        %v1919 = vpop.f32.mrf.mxu0
        %v1920 = vadd.f32 %v1807, %v1919
        %v1921 = vpop.f32.mrf.mxu0
        %v1922 = vadd.f32 %v1809, %v1921
        %1923 = vmatprep.mubr.bf16.mxu0 %v1385
        %1924 = vmatmul.mubr.bf16.gmra.mxu0 %v1384
        %v1925 = vpop.f32.mrf.mxu0
        %v1926 = vadd.f32 %v1813, %v1925
        %v1927 = vpop.f32.mrf.mxu0
        %v1928 = vadd.f32 %v1815, %v1927
        %v1929 = vpop.f32.mrf.mxu0
        %v1930 = vadd.f32 %v1817, %v1929
        %v1931 = vpop.f32.mrf.mxu0
        %v1932 = vadd.f32 %v1819, %v1931
        %1933 = vmatprep.mubr.bf16.mxu0 %v1389
        %1934 = vmatmul.mubr.bf16.gmra.mxu0 %v1388
        %v1935 = vpop.f32.mrf.mxu0
        %v1936 = vadd.f32 %v1823, %v1935
        %v1937 = vpop.f32.mrf.mxu0
        %v1938 = vadd.f32 %v1825, %v1937
        %v1939 = vpop.f32.mrf.mxu0
        %v1940 = vadd.f32 %v1827, %v1939
        %v1941 = vpop.f32.mrf.mxu0
        %v1942 = vadd.f32 %v1829, %v1941
        %1943 = vmatprep.mubr.bf16.mxu0 %v1393
        %1944 = vmatmul.mubr.bf16.gmra.mxu0 %v1392
        %v1945 = vpop.f32.mrf.mxu0
        %v1946 = vadd.f32 %v1833, %v1945
        %v1947 = vpop.f32.mrf.mxu0
        %v1948 = vadd.f32 %v1835, %v1947
        %v1949 = vpop.f32.mrf.mxu0
        %v1950 = vadd.f32 %v1837, %v1949
        %v1951 = vpop.f32.mrf.mxu0
        %v1952 = vadd.f32 %v1839, %v1951
        %1953 = vmatprep.mubr.bf16.mxu0 %v1397
        %1954 = vmatmul.mubr.bf16.gmra.mxu0 %v1396
        %v1955 = vpop.f32.mrf.mxu0
        %v1956 = vadd.f32 %v1843, %v1955
        %v1957 = vpop.f32.mrf.mxu0
        %v1958 = vadd.f32 %v1845, %v1957
        %v1959 = vpop.f32.mrf.mxu0
        %v1960 = vadd.f32 %v1847, %v1959
        %v1961 = vpop.f32.mrf.mxu0
        %v1962 = vadd.f32 %v1849, %v1961
        %1963 = vmatprep.mubr.bf16.mxu0 %v1401
        %1964 = vmatmul.mubr.bf16.gmra.mxu0 %v1400
        %v1965 = vpop.f32.mrf.mxu0
        %v1966 = vadd.f32 %v1853, %v1965
        %v1967 = vpop.f32.mrf.mxu0
        %v1968 = vadd.f32 %v1855, %v1967
        %v1969 = vpop.f32.mrf.mxu0
        %v1970 = vadd.f32 %v1857, %v1969
        %v1971 = vpop.f32.mrf.mxu0
        %v1972 = vadd.f32 %v1859, %v1971
        %1973 = vmatprep.mubr.bf16.mxu0 %v1405
        %1974 = vmatmul.mubr.bf16.gmra.mxu0 %v1404
        %v1975 = vpop.f32.mrf.mxu0
        %v1976 = vadd.f32 %v1863, %v1975
        %v1977 = vpop.f32.mrf.mxu0
        %v1978 = vadd.f32 %v1865, %v1977
        %v1979 = vpop.f32.mrf.mxu0
        %v1980 = vadd.f32 %v1867, %v1979
        %v1981 = vpop.f32.mrf.mxu0
        %v1982 = vadd.f32 %v1869, %v1981
        %1983 = vdwg.mxu0
        %v1984 = vadd.f32 %v1214, %v1906
        %v1985 = vadd.f32 %v1215, %v1908
        %v1986 = vadd.f32 %v1216, %v1910
        %v1987 = vadd.f32 %v1217, %v1912
        %v1988 = vadd.f32 %v1218, %v1916
        %v1989 = vadd.f32 %v1219, %v1918
        %v1990 = vadd.f32 %v1220, %v1920
        %v1991 = vadd.f32 %v1221, %v1922
        %v1992 = vadd.f32 %v1222, %v1926
        %v1993 = vadd.f32 %v1223, %v1928
        %v1994 = vadd.f32 %v1224, %v1930
        %v1995 = vadd.f32 %v1225, %v1932
        %v1996 = vadd.f32 %v1226, %v1936
        %v1997 = vadd.f32 %v1227, %v1938
        %v1998 = vadd.f32 %v1228, %v1940
        %v1999 = vadd.f32 %v1229, %v1942
        %v2000 = vadd.f32 %v1230, %v1946
        %v2001 = vadd.f32 %v1231, %v1948
        %v2002 = vadd.f32 %v1232, %v1950
        %v2003 = vadd.f32 %v1233, %v1952
        %v2004 = vadd.f32 %v1234, %v1956
        %v2005 = vadd.f32 %v1235, %v1958
        %v2006 = vadd.f32 %v1236, %v1960
        %v2007 = vadd.f32 %v1237, %v1962
        %v2008 = vadd.f32 %v1238, %v1966
        %v2009 = vadd.f32 %v1239, %v1968
        %v2010 = vadd.f32 %v1240, %v1970
        %v2011 = vadd.f32 %v1241, %v1972
        %v2012 = vadd.f32 %v1242, %v1976
        %v2013 = vadd.f32 %v1243, %v1978
        %v2014 = vadd.f32 %v1244, %v1980
        %v2015 = vadd.f32 %v1245, %v1982
        %2016 = vst [vmem:[#allocation2] sm:$0xff] %v1984
        %2017 = vst [vmem:[#allocation2 + $0x8] sm:$0xff] %v1985
        %2018 = vst [vmem:[#allocation2 + $0x10] sm:$0xff] %v1986
        %2019 = vst [vmem:[#allocation2 + $0x18] sm:$0xff] %v1987
        %2020 = vst [vmem:[#allocation2 + $0x20] sm:$0xff] %v1988
        %2021 = vst [vmem:[#allocation2 + $0x28] sm:$0xff] %v1989
        %2022 = vst [vmem:[#allocation2 + $0x30] sm:$0xff] %v1990
        %2023 = vst [vmem:[#allocation2 + $0x38] sm:$0xff] %v1991
        %2024 = vst [vmem:[#allocation2 + $0x40] sm:$0xff] %v1992
        %2025 = vst [vmem:[#allocation2 + $0x48] sm:$0xff] %v1993
        %2026 = vst [vmem:[#allocation2 + $0x50] sm:$0xff] %v1994
        %2027 = vst [vmem:[#allocation2 + $0x58] sm:$0xff] %v1995
        %2028 = vst [vmem:[#allocation2 + $0x60] sm:$0xff] %v1996
        %2029 = vst [vmem:[#allocation2 + $0x68] sm:$0xff] %v1997
        %2030 = vst [vmem:[#allocation2 + $0x70] sm:$0xff] %v1998
        %2031 = vst [vmem:[#allocation2 + $0x78] sm:$0xff] %v1999
        %2032 = vst [vmem:[#allocation2 + $0x80] sm:$0xff] %v2000
        %2033 = vst [vmem:[#allocation2 + $0x88] sm:$0xff] %v2001
        %2034 = vst [vmem:[#allocation2 + $0x90] sm:$0xff] %v2002
        %2035 = vst [vmem:[#allocation2 + $0x98] sm:$0xff] %v2003
        %2036 = vst [vmem:[#allocation2 + $0xa0] sm:$0xff] %v2004
        %2037 = vst [vmem:[#allocation2 + $0xa8] sm:$0xff] %v2005
        %2038 = vst [vmem:[#allocation2 + $0xb0] sm:$0xff] %v2006
        %2039 = vst [vmem:[#allocation2 + $0xb8] sm:$0xff] %v2007
        %2040 = vst [vmem:[#allocation2 + $0xc0] sm:$0xff] %v2008
        %2041 = vst [vmem:[#allocation2 + $0xc8] sm:$0xff] %v2009
        %2042 = vst [vmem:[#allocation2 + $0xd0] sm:$0xff] %v2010
        %2043 = vst [vmem:[#allocation2 + $0xd8] sm:$0xff] %v2011
        %2044 = vst [vmem:[#allocation2 + $0xe0] sm:$0xff] %v2012
        %2045 = vst [vmem:[#allocation2 + $0xe8] sm:$0xff] %v2013
        %2046 = vst [vmem:[#allocation2 + $0xf0] sm:$0xff] %v2014
        %2047 = vst [vmem:[#allocation2 + $0xf8] sm:$0xff] %v2015
        %p2048 = scmp.eq.s32.totalorder %s30, 1
        // Predicated region
        $region49: #{tpu_custom_call.1} parent=31 // pred_check
          %p2049 = pneg %p2048
        $region50: #{tpu_custom_call.1} parent=31 // pred_check_branch
          %2051 = sbr.rel (%p2049) target = $region52
        $region51: #{tpu_custom_call.1} parent=31 // pred_region
          %v2052 = vld [vmem:[#allocation2] sm:$0xff]
          %v2053 = vld [vmem:[#allocation2 + $0x8] sm:$0xff]
          %v2054 = vld [vmem:[#allocation2 + $0x10] sm:$0xff]
          %v2055 = vld [vmem:[#allocation2 + $0x18] sm:$0xff]
          %v2056 = vld [vmem:[#allocation2 + $0x20] sm:$0xff]
          %v2057 = vld [vmem:[#allocation2 + $0x28] sm:$0xff]
          %v2058 = vld [vmem:[#allocation2 + $0x30] sm:$0xff]
          %v2059 = vld [vmem:[#allocation2 + $0x38] sm:$0xff]
          %v2060 = vld [vmem:[#allocation2 + $0x40] sm:$0xff]
          %v2061 = vld [vmem:[#allocation2 + $0x48] sm:$0xff]
          %v2062 = vld [vmem:[#allocation2 + $0x50] sm:$0xff]
          %v2063 = vld [vmem:[#allocation2 + $0x58] sm:$0xff]
          %v2064 = vld [vmem:[#allocation2 + $0x60] sm:$0xff]
          %v2065 = vld [vmem:[#allocation2 + $0x68] sm:$0xff]
          %v2066 = vld [vmem:[#allocation2 + $0x70] sm:$0xff]
          %v2067 = vld [vmem:[#allocation2 + $0x78] sm:$0xff]
          %v2068 = vld [vmem:[#allocation2 + $0x80] sm:$0xff]
          %v2069 = vld [vmem:[#allocation2 + $0x88] sm:$0xff]
          %v2070 = vld [vmem:[#allocation2 + $0x90] sm:$0xff]
          %v2071 = vld [vmem:[#allocation2 + $0x98] sm:$0xff]
          %v2072 = vld [vmem:[#allocation2 + $0xa0] sm:$0xff]
          %v2073 = vld [vmem:[#allocation2 + $0xa8] sm:$0xff]
          %v2074 = vld [vmem:[#allocation2 + $0xb0] sm:$0xff]
          %v2075 = vld [vmem:[#allocation2 + $0xb8] sm:$0xff]
          %v2076 = vld [vmem:[#allocation2 + $0xc0] sm:$0xff]
          %v2077 = vld [vmem:[#allocation2 + $0xc8] sm:$0xff]
          %v2078 = vld [vmem:[#allocation2 + $0xd0] sm:$0xff]
          %v2079 = vld [vmem:[#allocation2 + $0xd8] sm:$0xff]
          %v2080 = vld [vmem:[#allocation2 + $0xe0] sm:$0xff]
          %v2081 = vld [vmem:[#allocation2 + $0xe8] sm:$0xff]
          %v2082 = vld [vmem:[#allocation2 + $0xf0] sm:$0xff]
          %v2083 = vld [vmem:[#allocation2 + $0xf8] sm:$0xff]
          %2084 = vst [vmem:[%s301] sm:$0xff] %v2052
          %2085 = vst [vmem:[%s301 + $0x8] sm:$0xff] %v2053
          %2086 = vst [vmem:[%s301 + $0x10] sm:$0xff] %v2054
          %2087 = vst [vmem:[%s301 + $0x18] sm:$0xff] %v2055
          %2088 = vst [vmem:[%s301 + $0x20] sm:$0xff] %v2056
          %2089 = vst [vmem:[%s301 + $0x28] sm:$0xff] %v2057
          %2090 = vst [vmem:[%s301 + $0x30] sm:$0xff] %v2058
          %2091 = vst [vmem:[%s301 + $0x38] sm:$0xff] %v2059
          %2092 = vst [vmem:[%s301 + $0x40] sm:$0xff] %v2060
          %2093 = vst [vmem:[%s301 + $0x48] sm:$0xff] %v2061
          %2094 = vst [vmem:[%s301 + $0x50] sm:$0xff] %v2062
          %2095 = vst [vmem:[%s301 + $0x58] sm:$0xff] %v2063
          %2096 = vst [vmem:[%s301 + $0x60] sm:$0xff] %v2064
          %2097 = vst [vmem:[%s301 + $0x68] sm:$0xff] %v2065
          %2098 = vst [vmem:[%s301 + $0x70] sm:$0xff] %v2066
          %2099 = vst [vmem:[%s301 + $0x78] sm:$0xff] %v2067
          %2100 = vst [vmem:[%s301 + $0x80] sm:$0xff] %v2068
          %2101 = vst [vmem:[%s301 + $0x88] sm:$0xff] %v2069
          %2102 = vst [vmem:[%s301 + $0x90] sm:$0xff] %v2070
          %2103 = vst [vmem:[%s301 + $0x98] sm:$0xff] %v2071
          %2104 = vst [vmem:[%s301 + $0xa0] sm:$0xff] %v2072
          %2105 = vst [vmem:[%s301 + $0xa8] sm:$0xff] %v2073
          %2106 = vst [vmem:[%s301 + $0xb0] sm:$0xff] %v2074
          %2107 = vst [vmem:[%s301 + $0xb8] sm:$0xff] %v2075
          %2108 = vst [vmem:[%s301 + $0xc0] sm:$0xff] %v2076
          %2109 = vst [vmem:[%s301 + $0xc8] sm:$0xff] %v2077
          %2110 = vst [vmem:[%s301 + $0xd0] sm:$0xff] %v2078
          %2111 = vst [vmem:[%s301 + $0xd8] sm:$0xff] %v2079
          %2112 = vst [vmem:[%s301 + $0xe0] sm:$0xff] %v2080
          %2113 = vst [vmem:[%s301 + $0xe8] sm:$0xff] %v2081
          %2114 = vst [vmem:[%s301 + $0xf0] sm:$0xff] %v2082
          %2115 = vst [vmem:[%s301 + $0xf8] sm:$0xff] %v2083
        $region52: #{tpu_custom_call.1} parent=31 // pred_fallthru
          _
        %s2116 = sand.u32 %s136, 1
        %s2117 = scalar_lea.sflag [#allocation5], %s2116
        %s2118 = sand.u32 %s136, 1
        %s2119 = smul.addr %s2118, 256
        %s2120 = scalar_lea.vmem [#allocation9], %s2119
        // Predicated region
        $region53: #{tpu_custom_call.1} parent=31 // pred_check
          %p2121 = pneg %p146
        $region54: #{tpu_custom_call.1} parent=31 // pred_check_branch
          %2123 = sbr.rel (%p2121) target = $region56
        $region55: #{tpu_custom_call.1} parent=31 // pred_region
          %s2124 = smul.u32 16, %s28
          %s2125 = smul.u32 2, %s29
          %s2127 = ssub.s32 4096, 4096
          %2128 = vsyncadd %s2117, %s2127
          %s2129 = smul.addr %s2124, 4
          %s2130 = sadd.s32 %s2125, %s2129
          %s2131 = smul.addr %s2130, 128
          %s2132 = scalar_lea.hbm %s3, %s2131
          %s2133 = sshll.u32 %s2120, 4
          %s2134 = int_to_ptr.vmem [resolvable:$true] %s2133
          %2139 = dma.vmem_to_hbm [thread:$0]  %s2134, 4096, %s2132, %s2117, 256, 512, 16
        $region56: #{tpu_custom_call.1} parent=31 // pred_fallthru
          _
      $region32: #{tpu_custom_call.1} parent=5 // pred_fallthru
        _
      %p2140 = scmp.le.s32.totalorder 2, %s18
      // Predicated region
      $region57: #{tpu_custom_call.1} parent=5 // pred_check
        %p2141 = pneg %p2140
      $region58: #{tpu_custom_call.1} parent=5 // pred_check_branch
        %2143 = sbr.rel (%p2141) target = $region60
      $region59: #{tpu_custom_call.1} parent=5 // pred_region
        %s2144 = ssub.s32 %s18, 2
        // Predicated region
        $region61: #{tpu_custom_call.1} parent=59 // pred_check
          %p2145 = pneg %p152
        $region62: #{tpu_custom_call.1} parent=59 // pred_check_branch
          %2147 = sbr.rel (%p2145) target = $region64
        $region63: #{tpu_custom_call.1} parent=59 // pred_region
          %s2148 = sand.u32 %s137, 1
          %s2149 = scalar_lea.sflag [#allocation5], %s2148
          %s2150 = sand.u32 %s137, 1
          %s2151 = smul.addr %s2150, 256
          %s2152 = scalar_lea.vmem [#allocation9], %s2151
          %2153 = dma.done %s2149, 4096
        $region64: #{tpu_custom_call.1} parent=59 // pred_fallthru
          _
      $region60: #{tpu_custom_call.1} parent=5 // pred_fallthru
        _
    $region6: #{tpu_custom_call.1} parent=1 // loop_footer
      %s22 = sadd.s32 1, %s18
    $region7: #{tpu_custom_call.1} parent=1 // loop_footer_branch
      %17 = sbr.rel target = $region3
    $region8: #{tpu_custom_call.1} parent=1 // loop_exit
      _
    %2154 = vsyncpa [#allocation4], 1
    %s2155 = scalar_lea.sflag [#allocation4], 1
    %2156 = vsyncpa %s2155, 1
    %2157 = vsyncpa [#allocation7], 1
    %s2158 = scalar_lea.sflag [#allocation7], 1
    %2159 = vsyncpa %s2158, 1
    %2160 = vsyncpa [#allocation5], 1
    %s2161 = scalar_lea.sflag [#allocation5], 1
    %2162 = vsyncpa %s2161, 1

</llo_original>
